<compile_context>
chip_gen: v5e
topology: v5e:2x2
jax: 0.10.0
libtpu: 0.0.40
codegen_flags: <defaults>
</compile_context>

<pallas_src>
import functools

import numpy as np
import jax
import jax.numpy as jnp
from jax.experimental import pallas as pl
from jax.experimental.pallas import tpu as pltpu

_MIB = 1024 * 1024


def _dw_deconv_kernel(x_ref, w_ref, b_ref, o_ref, xpad_ref, *,
                      K, dilation, L, Woff, H_CHUNK):
    """One (batch, channel-tile) block of a depthwise ConvTranspose2d, NHWC layout.

    x_ref:    (H_up, W_up, Ct)   VMEM - (zero-upsampled) input plane block, caller dtype
    w_ref:    (K*K, Ct)          VMEM - spatially flipped taps, channel-minor, f32
    b_ref:    (1, Ct)            VMEM - bias lane vector, f32
    o_ref:    (HO, WO, Ct)       VMEM - output block, caller dtype
    xpad_ref: (Hp, Wsc, Ct)      VMEM scratch - zero-bordered plane, caller dtype
    """
    H_up, W_up, Ct = x_ref.shape
    HO, WO, _ = o_ref.shape
    Hp, Wsc, _ = xpad_ref.shape
    zdt = xpad_ref.dtype

    # Zero only the L-wide border strips; the interior is fully overwritten below.
    if L > 0:
        xpad_ref[0:L, :, :] = jnp.zeros((L, Wsc, Ct), zdt)                        # top
        xpad_ref[L + H_up:Hp, :, :] = jnp.zeros((Hp - L - H_up, Wsc, Ct), zdt)    # bottom
        xpad_ref[L:L + H_up, 0:Woff, :] = jnp.zeros((H_up, Woff, Ct), zdt)        # left
        xpad_ref[L:L + H_up, Woff + W_up:Wsc, :] = jnp.zeros((H_up, L, Ct), zdt)  # right

    # Sublane-aligned interior copy (Woff is a multiple of 8; border lives only in VMEM).
    # TODO(synk): with a pl.ANY input and a manual double-buffered DMA this VMEM->VMEM
    # copy could be folded into the HBM fetch itself (most valuable on v7x's 64 MiB VMEM).
    xpad_ref[L:L + H_up, Woff:Woff + W_up, :] = x_ref[...]

    # Hoist the K*K per-channel tap lane-vectors (and bias) out of the row-chunk loop
    # when they comfortably fit in vregs; otherwise re-read per tap and let VMEM serve.
    lane_groups = (Ct + 127) // 128
    hoist_w = K * K * lane_groups <= 24
    wvecs = [w_ref[t:t + 1, :] for t in range(K * K)] if hoist_w else None
    bias = b_ref[...]                       # (1, Ct) f32, broadcasts over (rows, cols)
    out_dtype = o_ref.dtype

    def tap_vec(t):
        return wvecs[t] if hoist_w else w_ref[t:t + 1, :]

    def compute_chunk(h0, hc):
        acc = jnp.zeros((hc, WO, Ct), jnp.float32)
        for p in range(K):
            # One aligned, full-width slab load per (chunk, p); the K horizontal tap
            # shifts below are static in-register slices (XLU), not extra VMEM loads.
            # TODO(synk): on v6e/v7x the multiply could stay in bf16 (f32 accumulate) to
            # halve VALU work; kept f32 here so v5e (no bf16 VALU) is not penalized.
            slab = xpad_ref[pl.ds(h0 + p * dilation, hc), :, :].astype(jnp.float32)
            for q in range(K):
                ws = Woff - L + q * dilation
                acc = acc + slab[:, ws:ws + WO, :] * tap_vec(p * K + q)
        o_ref[pl.ds(h0, hc), :, :] = (acc + bias).astype(out_dtype)

    n_chunks = HO // H_CHUNK
    rem = HO - n_chunks * H_CHUNK
    if n_chunks > 0:
        @pl.loop(0, n_chunks)
        def _(ci):
            compute_chunk(pl.multiple_of(ci * H_CHUNK, H_CHUNK), H_CHUNK)
    if rem > 0:
        compute_chunk(n_chunks * H_CHUNK, rem)


def _vmem_budgets():
    """(vmem_limit_bytes, per-block byte budget), sized per TPU generation."""
    try:
        cap = int(pltpu.get_tpu_info().vmem_capacity_bytes)
    except Exception:
        cap = 64 * _MIB                      # conservative fallback: v7x per-TC VMEM
    vmem_limit = max(32 * _MIB, min((cap * 3) // 4, 100 * _MIB))
    return vmem_limit, (vmem_limit * 3) // 4


def _choose_c_tile(C, B, per_channel_bytes, budget_bytes):
    """Largest legal channel tile (== C, or a 128-multiple dividing C) fitting the budget."""
    if C % 128 != 0:
        # The channel (lane) axis can only be split on 128 boundaries; small / odd C must
        # use whole-C blocks.  TODO(synk): add spatial-H tiling (with halo rows) as a
        # fallback when a whole-C, whole-plane block exceeds the VMEM budget.
        return C
    ct = 128
    cand = 256
    while cand <= C:
        if C % cand == 0 and cand * per_channel_bytes <= budget_bytes:
            ct = cand
        cand += 128
    # Keep at least 2 grid iterations so both v7x TensorCores get work.
    if B * (C // ct) < 2 and C % 256 == 0:
        ct = min(ct, C // 2)
    return ct


def _choose_h_chunk(WO, Wsc, c_tile, vreg_budget=36):
    """Rows per chunk so acc + slab stay ~<= vreg_budget vregs (spill-free tap unroll)."""
    lane_groups = (c_tile + 127) // 128
    per_row = ((WO + 7) // 8 + (Wsc + 7) // 8) * lane_groups
    return max(1, min(8, vreg_budget // per_row))


def depthwise_deconv_nhwc(x, weight, bias, *, kernel_size=4, stride=1,
                          dilation=1, padding=1):
    """Depthwise nn.ConvTranspose2d (groups == channels) on an NHWC tensor.

    x:      (B, H, W, C) - channels on the minor (lane) axis; HBM I/O stays in x.dtype
    weight: (C, 1, K, K) - PyTorch ConvTranspose2d weight layout
    bias:   (C,)
    returns (B, HO, WO, C) in x.dtype
    """
    B, H, W, C = x.shape
    K = kernel_size
    stride = 1 if dilation > 1 else stride            # mirrors the PyTorch module
    L = dilation * (K - 1) - padding                  # border of the equivalent direct conv
    assert L >= 0, "padding > dilation*(kernel_size-1) not supported by this kernel"

    HO = (H - 1) * stride - 2 * padding + dilation * (K - 1) + 1
    WO = (W - 1) * stride - 2 * padding + dilation * (K - 1) + 1

    if stride > 1:
        # TODO(synk): decompose stride>1 into stride^2 polyphase output phases instead of
        # materializing the zero-upsampled tensor (the module's default path is stride=1).
        H_up, W_up = (H - 1) * stride + 1, (W - 1) * stride + 1
        x_up = jnp.zeros((B, H_up, W_up, C), x.dtype).at[:, ::stride, ::stride, :].set(x)
    else:
        H_up, W_up = H, W
        x_up = x

    # Scratch geometry: real data kept sublane-aligned along W inside the scratch.
    Woff = ((L + 7) // 8) * 8
    Hp = H_up + 2 * L
    Wsc = Woff + W_up + L

    itemsize = jnp.dtype(x.dtype).itemsize
    per_channel_bytes = (itemsize * (2 * H_up * W_up + 2 * HO * WO + Hp * Wsc)
                         + 8 * (K * K + 1))
    vmem_limit, tile_budget = _vmem_budgets()
    C_TILE = _choose_c_tile(C, B, per_channel_bytes, tile_budget)
    H_CHUNK = _choose_h_chunk(WO, Wsc, C_TILE)

    # Flipped depthwise taps, tap-major / channel-minor: each tap is a lane vector.
    w_taps = jnp.transpose(
        weight[:, 0, ::-1, ::-1].reshape(C, K * K)).astype(jnp.float32)   # (K*K, C)
    bias2d = bias.reshape(1, C).astype(jnp.float32)

    kern = functools.partial(_dw_deconv_kernel, K=K, dilation=dilation, L=L,
                             Woff=Woff, H_CHUNK=H_CHUNK)

    # TODO(synk): the module's default C=4 leaves 124/128 lanes idle (masked stores);
    # real workloads should use C as a multiple of 128 or fold batch onto the lane axis.
    return pl.pallas_call(
        kern,
        out_shape=jax.ShapeDtypeStruct((B, HO, WO, C), x.dtype),
        grid_spec=pltpu.PrefetchScalarGridSpec(
            num_scalar_prefetch=0,
            grid=(B, C // C_TILE),
            in_specs=[
                pl.BlockSpec((None, H_up, W_up, C_TILE), lambda b, c: (b, 0, 0, c)),
                pl.BlockSpec((K * K, C_TILE), lambda b, c: (0, c)),   # taps (VMEM)
                pl.BlockSpec((1, C_TILE), lambda b, c: (0, c)),       # bias (VMEM)
            ],
            out_specs=pl.BlockSpec((None, HO, WO, C_TILE), lambda b, c: (b, 0, 0, c)),
            scratch_shapes=[pltpu.VMEM((Hp, Wsc, C_TILE), x.dtype)],
        ),
        compiler_params=pltpu.CompilerParams(
            dimension_semantics=("parallel", "parallel"),   # shards across v7x's 2 TCs
            vmem_limit_bytes=int(vmem_limit),
        ),
    )(x_up, w_taps, bias2d)


def depthwise_deconv(x, weight, bias, *, kernel_size=4, stride=1, dilation=1, padding=1):
    """PyTorch-equivalent depthwiseDeconv forward: NCHW in, NCHW out (caller dtype).

    The NCHW<->NHWC transposes are layout plumbing done by XLA; callers that can keep
    activations NHWC end-to-end should call depthwise_deconv_nhwc directly.
    """
    x_nhwc = jnp.transpose(x, (0, 2, 3, 1))
    out = depthwise_deconv_nhwc(x_nhwc, weight, bias, kernel_size=kernel_size,
                                stride=stride, dilation=dilation, padding=padding)
    return jnp.transpose(out, (0, 3, 1, 2))


def _ref_deconv(x, w, b, K, stride, dilation, padding):
    """Naive numpy scatter reference of PyTorch ConvTranspose2d (depthwise)."""
    x = np.asarray(x, np.float32)
    w = np.asarray(w, np.float32)
    b = np.asarray(b, np.float32)
    B, C, H, W = x.shape
    stride = 1 if dilation > 1 else stride
    HO = (H - 1) * stride - 2 * padding + dilation * (K - 1) + 1
    WO = (W - 1) * stride - 2 * padding + dilation * (K - 1) + 1
    out = np.zeros((B, C, HO, WO), np.float32)
    for n in range(B):
        for c in range(C):
            for i in range(H):
                for j in range(W):
                    for p in range(K):
                        for q in range(K):
                            oi = i * stride - padding + p * dilation
                            oj = j * stride - padding + q * dilation
                            if 0 <= oi < HO and 0 <= oj < WO:
                                out[n, c, oi, oj] += x[n, c, i, j] * w[c, 0, p, q]
            out[n, c] += b[c]
    return out


if __name__ == "__main__":
    B, C, H, W = 2, 4, 16, 16          # input_channels == expanded_channels == 4
    K, STRIDE, DILATION, PADDING = 4, 1, 1, 1

    key = jax.random.PRNGKey(0)
    kx, kw, kb = jax.random.split(key, 3)
    x = jax.random.normal(kx, (B, C, H, W), jnp.float32)

    # Deterministic init matching PyTorch's default bound: sqrt(groups/(C_in*K*K)) = 0.25
    bound = float(np.sqrt(C / (C * K * K)))
    weight = jax.random.uniform(kw, (C, 1, K, K), jnp.float32, -bound, bound)
    bias = jax.random.uniform(kb, (C,), jnp.float32, -bound, bound)

    out = depthwise_deconv(x, weight, bias,
                           kernel_size=K, stride=STRIDE,
                           dilation=DILATION, padding=PADDING)
    out = jax.block_until_ready(out)

    ref = _ref_deconv(x, weight, bias, K, STRIDE, DILATION, PADDING)
    np.testing.assert_allclose(np.asarray(out), ref, rtol=1e-4, atol=1e-4)
    assert out.shape == (B, C, H + 1, W + 1)   # (17, 17) for the default config
    print("KERNEL_OK")
</pallas_src>

<mosaic_0001>
module attributes {stable_mosaic.version = 11 : i64} {
  func.func @_dw_deconv_kernel(%arg0: i32, %arg1: i32, %arg2: memref<1x16x16x4xf32, #tpu.memory_space<vmem>>, %arg3: memref<16x4xf32, #tpu.memory_space<vmem>>, %arg4: memref<1x4xf32, #tpu.memory_space<vmem>>, %arg5: memref<1x17x17x4xf32, #tpu.memory_space<vmem>>, %arg6: memref<20x26x4xf32, #tpu.memory_space<vmem>>) attributes {dimension_semantics = [#tpu.dimension_semantics<parallel>, #tpu.dimension_semantics<parallel>], iteration_bounds = array<i64: 2, 1>, scalar_prefetch = 0 : i64, scratch_operands = 1 : i64, tpu.core_type = #tpu.core_type<tc>, window_params = [{transform_indices = @transform_0, window_bounds = array<i64: 1, 16, 16, 4>}, {transform_indices = @transform_1, window_bounds = array<i64: 16, 4>}, {transform_indices = @transform_2, window_bounds = array<i64: 1, 4>}, {transform_indices = @transform_3, window_bounds = array<i64: 1, 17, 17, 4>}]} {
    %cst = arith.constant 0.000000e+00 : f32
    %0 = vector.broadcast %cst : f32 to vector<2x26x4xf32>
    %c0 = arith.constant 0 : index
    %c0_0 = arith.constant 0 : index
    %c0_1 = arith.constant 0 : index
    %1 = vector.load %arg6[%c0, %c0_0, %c0_1] : memref<20x26x4xf32, #tpu.memory_space<vmem>>, vector<2x26x4xf32>
    tpu.vector_store %arg6[%c0, %c0_0, %c0_1], %0 {strides = array<i32>} : memref<20x26x4xf32, #tpu.memory_space<vmem>>, vector<2x26x4xf32>,
    %cst_2 = arith.constant 0.000000e+00 : f32
    %2 = vector.broadcast %cst_2 : f32 to vector<2x26x4xf32>
    %c18 = arith.constant 18 : index
    %c0_3 = arith.constant 0 : index
    %c0_4 = arith.constant 0 : index
    %3 = vector.load %arg6[%c18, %c0_3, %c0_4] : memref<20x26x4xf32, #tpu.memory_space<vmem>>, vector<2x26x4xf32>
    tpu.vector_store %arg6[%c18, %c0_3, %c0_4], %2 {strides = array<i32>} : memref<20x26x4xf32, #tpu.memory_space<vmem>>, vector<2x26x4xf32>,
    %cst_5 = arith.constant 0.000000e+00 : f32
    %4 = vector.broadcast %cst_5 : f32 to vector<16x8x4xf32>
    %c2 = arith.constant 2 : index
    %c0_6 = arith.constant 0 : index
    %c0_7 = arith.constant 0 : index
    %5 = vector.load %arg6[%c2, %c0_6, %c0_7] : memref<20x26x4xf32, #tpu.memory_space<vmem>>, vector<16x8x4xf32>
    tpu.vector_store %arg6[%c2, %c0_6, %c0_7], %4 {strides = array<i32>} : memref<20x26x4xf32, #tpu.memory_space<vmem>>, vector<16x8x4xf32>,
    %cst_8 = arith.constant 0.000000e+00 : f32
    %6 = vector.broadcast %cst_8 : f32 to vector<16x2x4xf32>
    %c2_9 = arith.constant 2 : index
    %c24 = arith.constant 24 : index
    %c0_10 = arith.constant 0 : index
    %7 = vector.load %arg6[%c2_9, %c24, %c0_10] : memref<20x26x4xf32, #tpu.memory_space<vmem>>, vector<16x2x4xf32>
    tpu.vector_store %arg6[%c2_9, %c24, %c0_10], %6 {strides = array<i32>} : memref<20x26x4xf32, #tpu.memory_space<vmem>>, vector<16x2x4xf32>,
    %c0_11 = arith.constant 0 : index
    %c0_12 = arith.constant 0 : index
    %c0_13 = arith.constant 0 : index
    %c0_14 = arith.constant 0 : index
    %8 = vector.load %arg2[%c0_11, %c0_12, %c0_13, %c0_14] : memref<1x16x16x4xf32, #tpu.memory_space<vmem>>, vector<1x16x16x4xf32>
    %9 = vector.shape_cast %8 : vector<1x16x16x4xf32> to vector<16x16x4xf32>
    %c2_15 = arith.constant 2 : index
    %c8 = arith.constant 8 : index
    %c0_16 = arith.constant 0 : index
    %10 = vector.load %arg6[%c2_15, %c8, %c0_16] : memref<20x26x4xf32, #tpu.memory_space<vmem>>, vector<16x16x4xf32>
    tpu.vector_store %arg6[%c2_15, %c8, %c0_16], %9 {strides = array<i32>} : memref<20x26x4xf32, #tpu.memory_space<vmem>>, vector<16x16x4xf32>,
    %c0_17 = arith.constant 0 : index
    %c0_18 = arith.constant 0 : index
    %11 = vector.load %arg3[%c0_17, %c0_18] : memref<16x4xf32, #tpu.memory_space<vmem>>, vector<1x4xf32>
    %c1 = arith.constant 1 : index
    %c0_19 = arith.constant 0 : index
    %12 = vector.load %arg3[%c1, %c0_19] : memref<16x4xf32, #tpu.memory_space<vmem>>, vector<1x4xf32>
    %c2_20 = arith.constant 2 : index
    %c0_21 = arith.constant 0 : index
    %13 = vector.load %arg3[%c2_20, %c0_21] : memref<16x4xf32, #tpu.memory_space<vmem>>, vector<1x4xf32>
    %c3 = arith.constant 3 : index
    %c0_22 = arith.constant 0 : index
    %14 = vector.load %arg3[%c3, %c0_22] : memref<16x4xf32, #tpu.memory_space<vmem>>, vector<1x4xf32>
    %c4 = arith.constant 4 : index
    %c0_23 = arith.constant 0 : index
    %15 = vector.load %arg3[%c4, %c0_23] : memref<16x4xf32, #tpu.memory_space<vmem>>, vector<1x4xf32>
    %c5 = arith.constant 5 : index
    %c0_24 = arith.constant 0 : index
    %16 = vector.load %arg3[%c5, %c0_24] : memref<16x4xf32, #tpu.memory_space<vmem>>, vector<1x4xf32>
    %c6 = arith.constant 6 : index
    %c0_25 = arith.constant 0 : index
    %17 = vector.load %arg3[%c6, %c0_25] : memref<16x4xf32, #tpu.memory_space<vmem>>, vector<1x4xf32>
    %c7 = arith.constant 7 : index
    %c0_26 = arith.constant 0 : index
    %18 = vector.load %arg3[%c7, %c0_26] : memref<16x4xf32, #tpu.memory_space<vmem>>, vector<1x4xf32>
    %c8_27 = arith.constant 8 : index
    %c0_28 = arith.constant 0 : index
    %19 = vector.load %arg3[%c8_27, %c0_28] : memref<16x4xf32, #tpu.memory_space<vmem>>, vector<1x4xf32>
    %c9 = arith.constant 9 : index
    %c0_29 = arith.constant 0 : index
    %20 = vector.load %arg3[%c9, %c0_29] : memref<16x4xf32, #tpu.memory_space<vmem>>, vector<1x4xf32>
    %c10 = arith.constant 10 : index
    %c0_30 = arith.constant 0 : index
    %21 = vector.load %arg3[%c10, %c0_30] : memref<16x4xf32, #tpu.memory_space<vmem>>, vector<1x4xf32>
    %c11 = arith.constant 11 : index
    %c0_31 = arith.constant 0 : index
    %22 = vector.load %arg3[%c11, %c0_31] : memref<16x4xf32, #tpu.memory_space<vmem>>, vector<1x4xf32>
    %c12 = arith.constant 12 : index
    %c0_32 = arith.constant 0 : index
    %23 = vector.load %arg3[%c12, %c0_32] : memref<16x4xf32, #tpu.memory_space<vmem>>, vector<1x4xf32>
    %c13 = arith.constant 13 : index
    %c0_33 = arith.constant 0 : index
    %24 = vector.load %arg3[%c13, %c0_33] : memref<16x4xf32, #tpu.memory_space<vmem>>, vector<1x4xf32>
    %c14 = arith.constant 14 : index
    %c0_34 = arith.constant 0 : index
    %25 = vector.load %arg3[%c14, %c0_34] : memref<16x4xf32, #tpu.memory_space<vmem>>, vector<1x4xf32>
    %c15 = arith.constant 15 : index
    %c0_35 = arith.constant 0 : index
    %26 = vector.load %arg3[%c15, %c0_35] : memref<16x4xf32, #tpu.memory_space<vmem>>, vector<1x4xf32>
    %c0_36 = arith.constant 0 : index
    %c0_37 = arith.constant 0 : index
    %27 = vector.load %arg4[%c0_36, %c0_37] : memref<1x4xf32, #tpu.memory_space<vmem>>, vector<1x4xf32>
    %c0_i32 = arith.constant 0 : i32
    %c3_i32 = arith.constant 3 : i32
    %28 = arith.addi %c0_i32, %c3_i32 : i32
    %c1_i32 = arith.constant 1 : i32
    scf.for %arg7 = %c0_i32 to %28 step %c1_i32  : i32 {
      %c1_i32_54 = arith.constant 1 : i32
      %120 = arith.muli %arg7, %c1_i32_54 : i32
      %c0_i32_55 = arith.constant 0 : i32
      %121 = arith.addi %c0_i32_55, %120 : i32
      %c5_i32 = arith.constant 5 : i32
      %122 = arith.muli %121, %c5_i32 : i32
      %123 = tpu.assume_multiple %122, 5 : i32
      %cst_56 = arith.constant 0.000000e+00 : f32
      %124 = vector.broadcast %cst_56 : f32 to vector<5x17x4xf32>
      %c0_i32_57 = arith.constant 0 : i32
      %125 = arith.addi %123, %c0_i32_57 : i32
      %126 = arith.index_cast %125 : i32 to index
      %c0_58 = arith.constant 0 : index
      %c0_59 = arith.constant 0 : index
      %127 = vector.load %arg6[%126, %c0_58, %c0_59] : memref<20x26x4xf32, #tpu.memory_space<vmem>>, vector<5x26x4xf32>
      %128 = vector.extract_strided_slice %127 {offsets = [0, 6, 0], sizes = [5, 17, 4], strides = [1, 1, 1]} : vector<5x26x4xf32> to vector<5x17x4xf32>
      %129 = vector.shape_cast %11 : vector<1x4xf32> to vector<1x1x4xf32>
      %130 = vector.broadcast %129 : vector<1x1x4xf32> to vector<5x17x4xf32>
      %131 = arith.mulf %128, %130 : vector<5x17x4xf32>
      %132 = arith.addf %124, %131 : vector<5x17x4xf32>
      %133 = vector.extract_strided_slice %127 {offsets = [0, 7, 0], sizes = [5, 17, 4], strides = [1, 1, 1]} : vector<5x26x4xf32> to vector<5x17x4xf32>
      %134 = vector.shape_cast %12 : vector<1x4xf32> to vector<1x1x4xf32>
      %135 = vector.broadcast %134 : vector<1x1x4xf32> to vector<5x17x4xf32>
      %136 = arith.mulf %133, %135 : vector<5x17x4xf32>
      %137 = arith.addf %132, %136 : vector<5x17x4xf32>
      %138 = vector.extract_strided_slice %127 {offsets = [0, 8, 0], sizes = [5, 17, 4], strides = [1, 1, 1]} : vector<5x26x4xf32> to vector<5x17x4xf32>
      %139 = vector.shape_cast %13 : vector<1x4xf32> to vector<1x1x4xf32>
      %140 = vector.broadcast %139 : vector<1x1x4xf32> to vector<5x17x4xf32>
      %141 = arith.mulf %138, %140 : vector<5x17x4xf32>
      %142 = arith.addf %137, %141 : vector<5x17x4xf32>
      %143 = vector.extract_strided_slice %127 {offsets = [0, 9, 0], sizes = [5, 17, 4], strides = [1, 1, 1]} : vector<5x26x4xf32> to vector<5x17x4xf32>
      %144 = vector.shape_cast %14 : vector<1x4xf32> to vector<1x1x4xf32>
      %145 = vector.broadcast %144 : vector<1x1x4xf32> to vector<5x17x4xf32>
      %146 = arith.mulf %143, %145 : vector<5x17x4xf32>
      %147 = arith.addf %142, %146 : vector<5x17x4xf32>
      %c1_i32_60 = arith.constant 1 : i32
      %148 = arith.addi %123, %c1_i32_60 : i32
      %149 = arith.index_cast %148 : i32 to index
      %c0_61 = arith.constant 0 : index
      %c0_62 = arith.constant 0 : index
      %150 = vector.load %arg6[%149, %c0_61, %c0_62] : memref<20x26x4xf32, #tpu.memory_space<vmem>>, vector<5x26x4xf32>
      %151 = vector.extract_strided_slice %150 {offsets = [0, 6, 0], sizes = [5, 17, 4], strides = [1, 1, 1]} : vector<5x26x4xf32> to vector<5x17x4xf32>
      %152 = vector.shape_cast %15 : vector<1x4xf32> to vector<1x1x4xf32>
      %153 = vector.broadcast %152 : vector<1x1x4xf32> to vector<5x17x4xf32>
      %154 = arith.mulf %151, %153 : vector<5x17x4xf32>
      %155 = arith.addf %147, %154 : vector<5x17x4xf32>
      %156 = vector.extract_strided_slice %150 {offsets = [0, 7, 0], sizes = [5, 17, 4], strides = [1, 1, 1]} : vector<5x26x4xf32> to vector<5x17x4xf32>
      %157 = vector.shape_cast %16 : vector<1x4xf32> to vector<1x1x4xf32>
      %158 = vector.broadcast %157 : vector<1x1x4xf32> to vector<5x17x4xf32>
      %159 = arith.mulf %156, %158 : vector<5x17x4xf32>
      %160 = arith.addf %155, %159 : vector<5x17x4xf32>
      %161 = vector.extract_strided_slice %150 {offsets = [0, 8, 0], sizes = [5, 17, 4], strides = [1, 1, 1]} : vector<5x26x4xf32> to vector<5x17x4xf32>
      %162 = vector.shape_cast %17 : vector<1x4xf32> to vector<1x1x4xf32>
      %163 = vector.broadcast %162 : vector<1x1x4xf32> to vector<5x17x4xf32>
      %164 = arith.mulf %161, %163 : vector<5x17x4xf32>
      %165 = arith.addf %160, %164 : vector<5x17x4xf32>
      %166 = vector.extract_strided_slice %150 {offsets = [0, 9, 0], sizes = [5, 17, 4], strides = [1, 1, 1]} : vector<5x26x4xf32> to vector<5x17x4xf32>
      %167 = vector.shape_cast %18 : vector<1x4xf32> to vector<1x1x4xf32>
      %168 = vector.broadcast %167 : vector<1x1x4xf32> to vector<5x17x4xf32>
      %169 = arith.mulf %166, %168 : vector<5x17x4xf32>
      %170 = arith.addf %165, %169 : vector<5x17x4xf32>
      %c2_i32 = arith.constant 2 : i32
      %171 = arith.addi %123, %c2_i32 : i32
      %172 = arith.index_cast %171 : i32 to index
      %c0_63 = arith.constant 0 : index
      %c0_64 = arith.constant 0 : index
      %173 = vector.load %arg6[%172, %c0_63, %c0_64] : memref<20x26x4xf32, #tpu.memory_space<vmem>>, vector<5x26x4xf32>
      %174 = vector.extract_strided_slice %173 {offsets = [0, 6, 0], sizes = [5, 17, 4], strides = [1, 1, 1]} : vector<5x26x4xf32> to vector<5x17x4xf32>
      %175 = vector.shape_cast %19 : vector<1x4xf32> to vector<1x1x4xf32>
      %176 = vector.broadcast %175 : vector<1x1x4xf32> to vector<5x17x4xf32>
      %177 = arith.mulf %174, %176 : vector<5x17x4xf32>
      %178 = arith.addf %170, %177 : vector<5x17x4xf32>
      %179 = vector.extract_strided_slice %173 {offsets = [0, 7, 0], sizes = [5, 17, 4], strides = [1, 1, 1]} : vector<5x26x4xf32> to vector<5x17x4xf32>
      %180 = vector.shape_cast %20 : vector<1x4xf32> to vector<1x1x4xf32>
      %181 = vector.broadcast %180 : vector<1x1x4xf32> to vector<5x17x4xf32>
      %182 = arith.mulf %179, %181 : vector<5x17x4xf32>
      %183 = arith.addf %178, %182 : vector<5x17x4xf32>
      %184 = vector.extract_strided_slice %173 {offsets = [0, 8, 0], sizes = [5, 17, 4], strides = [1, 1, 1]} : vector<5x26x4xf32> to vector<5x17x4xf32>
      %185 = vector.shape_cast %21 : vector<1x4xf32> to vector<1x1x4xf32>
      %186 = vector.broadcast %185 : vector<1x1x4xf32> to vector<5x17x4xf32>
      %187 = arith.mulf %184, %186 : vector<5x17x4xf32>
      %188 = arith.addf %183, %187 : vector<5x17x4xf32>
      %189 = vector.extract_strided_slice %173 {offsets = [0, 9, 0], sizes = [5, 17, 4], strides = [1, 1, 1]} : vector<5x26x4xf32> to vector<5x17x4xf32>
      %190 = vector.shape_cast %22 : vector<1x4xf32> to vector<1x1x4xf32>
      %191 = vector.broadcast %190 : vector<1x1x4xf32> to vector<5x17x4xf32>
      %192 = arith.mulf %189, %191 : vector<5x17x4xf32>
      %193 = arith.addf %188, %192 : vector<5x17x4xf32>
      %c3_i32_65 = arith.constant 3 : i32
      %194 = arith.addi %123, %c3_i32_65 : i32
      %195 = arith.index_cast %194 : i32 to index
      %c0_66 = arith.constant 0 : index
      %c0_67 = arith.constant 0 : index
      %196 = vector.load %arg6[%195, %c0_66, %c0_67] : memref<20x26x4xf32, #tpu.memory_space<vmem>>, vector<5x26x4xf32>
      %197 = vector.extract_strided_slice %196 {offsets = [0, 6, 0], sizes = [5, 17, 4], strides = [1, 1, 1]} : vector<5x26x4xf32> to vector<5x17x4xf32>
      %198 = vector.shape_cast %23 : vector<1x4xf32> to vector<1x1x4xf32>
      %199 = vector.broadcast %198 : vector<1x1x4xf32> to vector<5x17x4xf32>
      %200 = arith.mulf %197, %199 : vector<5x17x4xf32>
      %201 = arith.addf %193, %200 : vector<5x17x4xf32>
      %202 = vector.extract_strided_slice %196 {offsets = [0, 7, 0], sizes = [5, 17, 4], strides = [1, 1, 1]} : vector<5x26x4xf32> to vector<5x17x4xf32>
      %203 = vector.shape_cast %24 : vector<1x4xf32> to vector<1x1x4xf32>
      %204 = vector.broadcast %203 : vector<1x1x4xf32> to vector<5x17x4xf32>
      %205 = arith.mulf %202, %204 : vector<5x17x4xf32>
      %206 = arith.addf %201, %205 : vector<5x17x4xf32>
      %207 = vector.extract_strided_slice %196 {offsets = [0, 8, 0], sizes = [5, 17, 4], strides = [1, 1, 1]} : vector<5x26x4xf32> to vector<5x17x4xf32>
      %208 = vector.shape_cast %25 : vector<1x4xf32> to vector<1x1x4xf32>
      %209 = vector.broadcast %208 : vector<1x1x4xf32> to vector<5x17x4xf32>
      %210 = arith.mulf %207, %209 : vector<5x17x4xf32>
      %211 = arith.addf %206, %210 : vector<5x17x4xf32>
      %212 = vector.extract_strided_slice %196 {offsets = [0, 9, 0], sizes = [5, 17, 4], strides = [1, 1, 1]} : vector<5x26x4xf32> to vector<5x17x4xf32>
      %213 = vector.shape_cast %26 : vector<1x4xf32> to vector<1x1x4xf32>
      %214 = vector.broadcast %213 : vector<1x1x4xf32> to vector<5x17x4xf32>
      %215 = arith.mulf %212, %214 : vector<5x17x4xf32>
      %216 = arith.addf %211, %215 : vector<5x17x4xf32>
      %217 = vector.shape_cast %27 : vector<1x4xf32> to vector<1x1x4xf32>
      %218 = vector.broadcast %217 : vector<1x1x4xf32> to vector<5x17x4xf32>
      %219 = arith.addf %216, %218 : vector<5x17x4xf32>
      %c0_68 = arith.constant 0 : index
      %220 = arith.index_cast %123 : i32 to index
      %c0_69 = arith.constant 0 : index
      %c0_70 = arith.constant 0 : index
      %221 = vector.load %arg5[%c0_68, %220, %c0_69, %c0_70] : memref<1x17x17x4xf32, #tpu.memory_space<vmem>>, vector<1x5x17x4xf32>
      %222 = vector.shape_cast %221 : vector<1x5x17x4xf32> to vector<5x17x4xf32>
      %223 = vector.shape_cast %219 : vector<5x17x4xf32> to vector<1x5x17x4xf32>
      tpu.vector_store %arg5[%c0_68, %220, %c0_69, %c0_70], %223 {strides = array<i32>} : memref<1x17x17x4xf32, #tpu.memory_space<vmem>>, vector<1x5x17x4xf32>,
    }
    %c3_i32_38 = arith.constant 3 : i32
    %cst_39 = arith.constant 0.000000e+00 : f32
    %29 = vector.broadcast %cst_39 : f32 to vector<2x17x4xf32>
    %c15_40 = arith.constant 15 : index
    %c0_41 = arith.constant 0 : index
    %c0_42 = arith.constant 0 : index
    %30 = vector.load %arg6[%c15_40, %c0_41, %c0_42] : memref<20x26x4xf32, #tpu.memory_space<vmem>>, vector<2x26x4xf32>
    %31 = vector.extract_strided_slice %30 {offsets = [0, 6, 0], sizes = [2, 17, 4], strides = [1, 1, 1]} : vector<2x26x4xf32> to vector<2x17x4xf32>
    %32 = vector.shape_cast %11 : vector<1x4xf32> to vector<1x1x4xf32>
    %33 = vector.broadcast %32 : vector<1x1x4xf32> to vector<2x17x4xf32>
    %34 = arith.mulf %31, %33 : vector<2x17x4xf32>
    %35 = arith.addf %29, %34 : vector<2x17x4xf32>
    %36 = vector.extract_strided_slice %30 {offsets = [0, 7, 0], sizes = [2, 17, 4], strides = [1, 1, 1]} : vector<2x26x4xf32> to vector<2x17x4xf32>
    %37 = vector.shape_cast %12 : vector<1x4xf32> to vector<1x1x4xf32>
    %38 = vector.broadcast %37 : vector<1x1x4xf32> to vector<2x17x4xf32>
    %39 = arith.mulf %36, %38 : vector<2x17x4xf32>
    %40 = arith.addf %35, %39 : vector<2x17x4xf32>
    %41 = vector.extract_strided_slice %30 {offsets = [0, 8, 0], sizes = [2, 17, 4], strides = [1, 1, 1]} : vector<2x26x4xf32> to vector<2x17x4xf32>
    %42 = vector.shape_cast %13 : vector<1x4xf32> to vector<1x1x4xf32>
    %43 = vector.broadcast %42 : vector<1x1x4xf32> to vector<2x17x4xf32>
    %44 = arith.mulf %41, %43 : vector<2x17x4xf32>
    %45 = arith.addf %40, %44 : vector<2x17x4xf32>
    %46 = vector.extract_strided_slice %30 {offsets = [0, 9, 0], sizes = [2, 17, 4], strides = [1, 1, 1]} : vector<2x26x4xf32> to vector<2x17x4xf32>
    %47 = vector.shape_cast %14 : vector<1x4xf32> to vector<1x1x4xf32>
    %48 = vector.broadcast %47 : vector<1x1x4xf32> to vector<2x17x4xf32>
    %49 = arith.mulf %46, %48 : vector<2x17x4xf32>
    %50 = arith.addf %45, %49 : vector<2x17x4xf32>
    %c16 = arith.constant 16 : index
    %c0_43 = arith.constant 0 : index
    %c0_44 = arith.constant 0 : index
    %51 = vector.load %arg6[%c16, %c0_43, %c0_44] : memref<20x26x4xf32, #tpu.memory_space<vmem>>, vector<2x26x4xf32>
    %52 = vector.extract_strided_slice %51 {offsets = [0, 6, 0], sizes = [2, 17, 4], strides = [1, 1, 1]} : vector<2x26x4xf32> to vector<2x17x4xf32>
    %53 = vector.shape_cast %15 : vector<1x4xf32> to vector<1x1x4xf32>
    %54 = vector.broadcast %53 : vector<1x1x4xf32> to vector<2x17x4xf32>
    %55 = arith.mulf %52, %54 : vector<2x17x4xf32>
    %56 = arith.addf %50, %55 : vector<2x17x4xf32>
    %57 = vector.extract_strided_slice %51 {offsets = [0, 7, 0], sizes = [2, 17, 4], strides = [1, 1, 1]} : vector<2x26x4xf32> to vector<2x17x4xf32>
    %58 = vector.shape_cast %16 : vector<1x4xf32> to vector<1x1x4xf32>
    %59 = vector.broadcast %58 : vector<1x1x4xf32> to vector<2x17x4xf32>
    %60 = arith.mulf %57, %59 : vector<2x17x4xf32>
    %61 = arith.addf %56, %60 : vector<2x17x4xf32>
    %62 = vector.extract_strided_slice %51 {offsets = [0, 8, 0], sizes = [2, 17, 4], strides = [1, 1, 1]} : vector<2x26x4xf32> to vector<2x17x4xf32>
    %63 = vector.shape_cast %17 : vector<1x4xf32> to vector<1x1x4xf32>
    %64 = vector.broadcast %63 : vector<1x1x4xf32> to vector<2x17x4xf32>
    %65 = arith.mulf %62, %64 : vector<2x17x4xf32>
    %66 = arith.addf %61, %65 : vector<2x17x4xf32>
    %67 = vector.extract_strided_slice %51 {offsets = [0, 9, 0], sizes = [2, 17, 4], strides = [1, 1, 1]} : vector<2x26x4xf32> to vector<2x17x4xf32>
    %68 = vector.shape_cast %18 : vector<1x4xf32> to vector<1x1x4xf32>
    %69 = vector.broadcast %68 : vector<1x1x4xf32> to vector<2x17x4xf32>
    %70 = arith.mulf %67, %69 : vector<2x17x4xf32>
    %71 = arith.addf %66, %70 : vector<2x17x4xf32>
    %c17 = arith.constant 17 : index
    %c0_45 = arith.constant 0 : index
    %c0_46 = arith.constant 0 : index
    %72 = vector.load %arg6[%c17, %c0_45, %c0_46] : memref<20x26x4xf32, #tpu.memory_space<vmem>>, vector<2x26x4xf32>
    %73 = vector.extract_strided_slice %72 {offsets = [0, 6, 0], sizes = [2, 17, 4], strides = [1, 1, 1]} : vector<2x26x4xf32> to vector<2x17x4xf32>
    %74 = vector.shape_cast %19 : vector<1x4xf32> to vector<1x1x4xf32>
    %75 = vector.broadcast %74 : vector<1x1x4xf32> to vector<2x17x4xf32>
    %76 = arith.mulf %73, %75 : vector<2x17x4xf32>
    %77 = arith.addf %71, %76 : vector<2x17x4xf32>
    %78 = vector.extract_strided_slice %72 {offsets = [0, 7, 0], sizes = [2, 17, 4], strides = [1, 1, 1]} : vector<2x26x4xf32> to vector<2x17x4xf32>
    %79 = vector.shape_cast %20 : vector<1x4xf32> to vector<1x1x4xf32>
    %80 = vector.broadcast %79 : vector<1x1x4xf32> to vector<2x17x4xf32>
    %81 = arith.mulf %78, %80 : vector<2x17x4xf32>
    %82 = arith.addf %77, %81 : vector<2x17x4xf32>
    %83 = vector.extract_strided_slice %72 {offsets = [0, 8, 0], sizes = [2, 17, 4], strides = [1, 1, 1]} : vector<2x26x4xf32> to vector<2x17x4xf32>
    %84 = vector.shape_cast %21 : vector<1x4xf32> to vector<1x1x4xf32>
    %85 = vector.broadcast %84 : vector<1x1x4xf32> to vector<2x17x4xf32>
    %86 = arith.mulf %83, %85 : vector<2x17x4xf32>
    %87 = arith.addf %82, %86 : vector<2x17x4xf32>
    %88 = vector.extract_strided_slice %72 {offsets = [0, 9, 0], sizes = [2, 17, 4], strides = [1, 1, 1]} : vector<2x26x4xf32> to vector<2x17x4xf32>
    %89 = vector.shape_cast %22 : vector<1x4xf32> to vector<1x1x4xf32>
    %90 = vector.broadcast %89 : vector<1x1x4xf32> to vector<2x17x4xf32>
    %91 = arith.mulf %88, %90 : vector<2x17x4xf32>
    %92 = arith.addf %87, %91 : vector<2x17x4xf32>
    %c18_47 = arith.constant 18 : index
    %c0_48 = arith.constant 0 : index
    %c0_49 = arith.constant 0 : index
    %93 = vector.load %arg6[%c18_47, %c0_48, %c0_49] : memref<20x26x4xf32, #tpu.memory_space<vmem>>, vector<2x26x4xf32>
    %94 = vector.extract_strided_slice %93 {offsets = [0, 6, 0], sizes = [2, 17, 4], strides = [1, 1, 1]} : vector<2x26x4xf32> to vector<2x17x4xf32>
    %95 = vector.shape_cast %23 : vector<1x4xf32> to vector<1x1x4xf32>
    %96 = vector.broadcast %95 : vector<1x1x4xf32> to vector<2x17x4xf32>
    %97 = arith.mulf %94, %96 : vector<2x17x4xf32>
    %98 = arith.addf %92, %97 : vector<2x17x4xf32>
    %99 = vector.extract_strided_slice %93 {offsets = [0, 7, 0], sizes = [2, 17, 4], strides = [1, 1, 1]} : vector<2x26x4xf32> to vector<2x17x4xf32>
    %100 = vector.shape_cast %24 : vector<1x4xf32> to vector<1x1x4xf32>
    %101 = vector.broadcast %100 : vector<1x1x4xf32> to vector<2x17x4xf32>
    %102 = arith.mulf %99, %101 : vector<2x17x4xf32>
    %103 = arith.addf %98, %102 : vector<2x17x4xf32>
    %104 = vector.extract_strided_slice %93 {offsets = [0, 8, 0], sizes = [2, 17, 4], strides = [1, 1, 1]} : vector<2x26x4xf32> to vector<2x17x4xf32>
    %105 = vector.shape_cast %25 : vector<1x4xf32> to vector<1x1x4xf32>
    %106 = vector.broadcast %105 : vector<1x1x4xf32> to vector<2x17x4xf32>
    %107 = arith.mulf %104, %106 : vector<2x17x4xf32>
    %108 = arith.addf %103, %107 : vector<2x17x4xf32>
    %109 = vector.extract_strided_slice %93 {offsets = [0, 9, 0], sizes = [2, 17, 4], strides = [1, 1, 1]} : vector<2x26x4xf32> to vector<2x17x4xf32>
    %110 = vector.shape_cast %26 : vector<1x4xf32> to vector<1x1x4xf32>
    %111 = vector.broadcast %110 : vector<1x1x4xf32> to vector<2x17x4xf32>
    %112 = arith.mulf %109, %111 : vector<2x17x4xf32>
    %113 = arith.addf %108, %112 : vector<2x17x4xf32>
    %114 = vector.shape_cast %27 : vector<1x4xf32> to vector<1x1x4xf32>
    %115 = vector.broadcast %114 : vector<1x1x4xf32> to vector<2x17x4xf32>
    %116 = arith.addf %113, %115 : vector<2x17x4xf32>
    %c0_50 = arith.constant 0 : index
    %c15_51 = arith.constant 15 : index
    %c0_52 = arith.constant 0 : index
    %c0_53 = arith.constant 0 : index
    %117 = vector.load %arg5[%c0_50, %c15_51, %c0_52, %c0_53] : memref<1x17x17x4xf32, #tpu.memory_space<vmem>>, vector<1x2x17x4xf32>
    %118 = vector.shape_cast %117 : vector<1x2x17x4xf32> to vector<2x17x4xf32>
    %119 = vector.shape_cast %116 : vector<2x17x4xf32> to vector<1x2x17x4xf32>
    tpu.vector_store %arg5[%c0_50, %c15_51, %c0_52, %c0_53], %119 {strides = array<i32>} : memref<1x17x17x4xf32, #tpu.memory_space<vmem>>, vector<1x2x17x4xf32>,
    return
  }
  func.func @transform_0(%arg0: i32, %arg1: i32) -> (i32, i32, i32, i32) {
    %c0_i32 = arith.constant 0 : i32
    %c0_i32_0 = arith.constant 0 : i32
    %c0_i32_1 = arith.constant 0 : i32
    return %arg0, %c0_i32, %c0_i32_0, %arg1 : i32, i32, i32, i32
  }
  func.func @transform_1(%arg0: i32, %arg1: i32) -> (i32, i32) {
    %c0_i32 = arith.constant 0 : i32
    %c0_i32_0 = arith.constant 0 : i32
    return %c0_i32, %arg1 : i32, i32
  }
  func.func @transform_2(%arg0: i32, %arg1: i32) -> (i32, i32) {
    %c0_i32 = arith.constant 0 : i32
    %c0_i32_0 = arith.constant 0 : i32
    return %c0_i32, %arg1 : i32, i32
  }
  func.func @transform_3(%arg0: i32, %arg1: i32) -> (i32, i32, i32, i32) {
    %c0_i32 = arith.constant 0 : i32
    %c0_i32_0 = arith.constant 0 : i32
    %c0_i32_1 = arith.constant 0 : i32
    return %arg0, %c0_i32, %c0_i32_0, %arg1 : i32, i32, i32, i32
  }
}

</mosaic_0001>

<llo_original>
// kernel: tpu_custom_call.1
$region0: #{tpu_custom_call.1}
  #allocation0 [shape = 'u32[]', space=smem, size = 0x4, offset = 0x4, fixed_abs, tag = 'smem constant byte address 0x4 - core index']
  #allocation1 [shape = 'u32[72,128]{1,0:T(1,128)}', space=vmem, size = 0x9000, scoped, tag = 'internal scratch']
  #allocation2 [shape = 'f32[20,26,4]{2,1,0:T(8,128)}', space=vmem, size = 0x50000, scoped, tag = 'scratch operand']
  %s0 = inlined_call_operand.vmem [shape: f32[2,16,16,4], index: 0, kind: input, shape index: {}]
  %s1 = inlined_call_operand.vmem [shape: f32[16,4], index: 1, kind: input, shape index: {}]
  %s2 = inlined_call_operand.vmem [shape: f32[1,4], index: 2, kind: input, shape index: {}]
  %s3 = inlined_call_operand.vmem [shape: f32[2,17,17,4], index: 3, kind: output, shape index: {}]
  %s4 = sld [smem:[#allocation0]]
  $region52: #{tpu_custom_call.1} parent=0
    _
  %s6 = ssub.s32 1, %s4
  %s7 = scalar_select 0, %s6, %s4
  loop: start=0, step=1, limit=4
  $region2: #{tpu_custom_call.1} parent=0 // loop_pre_header
    _
  $region3: #{tpu_custom_call.1} parent=0 // loop_header
    %s9 = sphi 0, %s13
    %p10 = scmp.ge.s32.totalorder %s9, 4
    %s16 = sphi 0, %s28
    %s17 = sphi 0, %s24
    %s18 = sphi 0, %s16
    %s19 = sphi 0, %s17
    %s20 = sphi 0, %s18
    %s21 = sphi 0, %s19
    %s33 = sphi 0, %s35
    %s36 = sphi 0, %s33
    %s37 = sphi 0, %s36
    %s53 = sphi 0, %s37
    %s59 = sphi 0, %s61
    %s62 = sphi 0, %s59
    %s63 = sphi 0, %s62
    %s79 = sphi 0, %s63
    %s85 = sphi 0, %s87
    %s88 = sphi 0, %s85
    %s89 = sphi 0, %s88
    %s105 = sphi 0, %s89
    %s113 = sphi 0, %s115
    %s116 = sphi 0, %s113
    %s117 = sphi 0, %s116
    %s133 = sphi 0, %s117
  $region4: #{tpu_custom_call.1} parent=0 // loop_header_branch
    %12 = sbr.rel (%p10) target = $region8
  $region5: #{tpu_custom_call.1} parent=0 // loop_body
    %s14 = ssub.s32 %s9, 1
    %s15 = ssub.s32 %s9, 2
    %s22 = sadd.s32 1, %s17
    %p23 = scmp.ge.s32.totalorder %s22, 1
    %s24 = scalar_select %p23, 0, %s22
    %s25 = sadd.s32 1, %s16
    %s26 = scalar_select %p23, %s25, %s16
    %p27 = scmp.ge.s32.totalorder %s26, 2
    %s28 = scalar_select %p27, 0, %s26
    %s29 = ssub.s32 %s16, %s28
    %s30 = ssub.s32 %s17, %s24
    %s31 = sor.u32 %s29, %s30
    %p32 = scmp.eq.s32.totalorder %s31, 0
    %s34 = sadd.s32 %s33, 1
    %s35 = scalar_select %p32, %s33, %s34
    %p38 = pneg %p32
    %p39 = scmp.eq.s32.totalorder %s9, 1
    %p40 = por %p38, %p39
    %p41 = scmp.ne.s32.totalorder %s33, %s36
    %p42 = scmp.eq.s32.totalorder %s9, 0
    %p43 = por %p41, %p42
    %p44 = scmp.ne.s32.totalorder %s33, %s36
    %p45 = scmp.eq.s32.totalorder %s14, 1
    %p46 = por %p44, %p45
    %p47 = scmp.ne.s32.totalorder %s36, %s37
    %p48 = scmp.eq.s32.totalorder %s14, 0
    %p49 = por %p47, %p48
    %p50 = scmp.ne.s32.totalorder %s36, %s37
    %p51 = scmp.eq.s32.totalorder %s15, 1
    %p52 = por %p50, %p51
    %p54 = scmp.ne.s32.totalorder %s37, %s53
    %p55 = scmp.eq.s32.totalorder %s15, 0
    %p56 = por %p54, %p55
    %s57 = ssub.s32 %s17, %s24
    %p58 = scmp.eq.s32.totalorder %s57, 0
    %s60 = sadd.s32 %s59, 1
    %s61 = scalar_select %p58, %s59, %s60
    %p64 = pneg %p58
    %p65 = scmp.eq.s32.totalorder %s9, 1
    %p66 = por %p64, %p65
    %p67 = scmp.ne.s32.totalorder %s59, %s62
    %p68 = scmp.eq.s32.totalorder %s9, 0
    %p69 = por %p67, %p68
    %p70 = scmp.ne.s32.totalorder %s59, %s62
    %p71 = scmp.eq.s32.totalorder %s14, 1
    %p72 = por %p70, %p71
    %p73 = scmp.ne.s32.totalorder %s62, %s63
    %p74 = scmp.eq.s32.totalorder %s14, 0
    %p75 = por %p73, %p74
    %p76 = scmp.ne.s32.totalorder %s62, %s63
    %p77 = scmp.eq.s32.totalorder %s15, 1
    %p78 = por %p76, %p77
    %p80 = scmp.ne.s32.totalorder %s63, %s79
    %p81 = scmp.eq.s32.totalorder %s15, 0
    %p82 = por %p80, %p81
    %s83 = ssub.s32 %s17, %s24
    %p84 = scmp.eq.s32.totalorder %s83, 0
    %s86 = sadd.s32 %s85, 1
    %s87 = scalar_select %p84, %s85, %s86
    %p90 = pneg %p84
    %p91 = scmp.eq.s32.totalorder %s9, 1
    %p92 = por %p90, %p91
    %p93 = scmp.ne.s32.totalorder %s85, %s88
    %p94 = scmp.eq.s32.totalorder %s9, 0
    %p95 = por %p93, %p94
    %p96 = scmp.ne.s32.totalorder %s85, %s88
    %p97 = scmp.eq.s32.totalorder %s14, 1
    %p98 = por %p96, %p97
    %p99 = scmp.ne.s32.totalorder %s88, %s89
    %p100 = scmp.eq.s32.totalorder %s14, 0
    %p101 = por %p99, %p100
    %p102 = scmp.ne.s32.totalorder %s88, %s89
    %p103 = scmp.eq.s32.totalorder %s15, 1
    %p104 = por %p102, %p103
    %p106 = scmp.ne.s32.totalorder %s89, %s105
    %p107 = scmp.eq.s32.totalorder %s15, 0
    %p108 = por %p106, %p107
    %s109 = ssub.s32 %s16, %s28
    %s110 = ssub.s32 %s17, %s24
    %s111 = sor.u32 %s109, %s110
    %p112 = scmp.eq.s32.totalorder %s111, 0
    %s114 = sadd.s32 %s113, 1
    %s115 = scalar_select %p112, %s113, %s114
    %p118 = pneg %p112
    %p119 = scmp.eq.s32.totalorder %s9, 1
    %p120 = por %p118, %p119
    %p121 = scmp.ne.s32.totalorder %s113, %s116
    %p122 = scmp.eq.s32.totalorder %s9, 0
    %p123 = por %p121, %p122
    %p124 = scmp.ne.s32.totalorder %s113, %s116
    %p125 = scmp.eq.s32.totalorder %s14, 1
    %p126 = por %p124, %p125
    %p127 = scmp.ne.s32.totalorder %s116, %s117
    %p128 = scmp.eq.s32.totalorder %s14, 0
    %p129 = por %p127, %p128
    %p130 = scmp.ne.s32.totalorder %s116, %s117
    %p131 = scmp.eq.s32.totalorder %s15, 1
    %p132 = por %p130, %p131
    %p134 = scmp.ne.s32.totalorder %s117, %s133
    %p135 = scmp.eq.s32.totalorder %s15, 0
    %p136 = por %p134, %p135
    %p137 = scmp.le.s32.totalorder 1, %s9
    %p138 = scmp.lt.s32.totalorder %s9, 3
    %p139 = pnand %p137, %p138
    %p140 = pneg %p139
    // Predicated region
    $region9: #{tpu_custom_call.1} parent=5 // pred_check
      _
    $region10: #{tpu_custom_call.1} parent=5 // pred_check_branch
      %142 = sbr.rel (%p139) target = $region12
    $region11: #{tpu_custom_call.1} parent=5 // pred_region
      %s143 = ssub.s32 %s9, 1
      // Predicated region
      $region13: #{tpu_custom_call.1} parent=11 // pred_check
        %p144 = pneg %p75
      $region14: #{tpu_custom_call.1} parent=11 // pred_check_branch
        %146 = sbr.rel (%p144) target = $region16
      $region15: #{tpu_custom_call.1} parent=11 // pred_region
        %p147 = scmp.lt.s32.totalorder %s19, 0
        %s148 = scalar_select %p147, %s19, 0
        %s149 = smul.addr %s148, 8
        %s150 = scalar_lea.vmem %s1, %s149
      $region16: #{tpu_custom_call.1} parent=11 // pred_fallthru
        _
      // Predicated region
      $region17: #{tpu_custom_call.1} parent=11 // pred_check
        %p151 = pneg %p101
      $region18: #{tpu_custom_call.1} parent=11 // pred_check_branch
        %153 = sbr.rel (%p151) target = $region20
      $region19: #{tpu_custom_call.1} parent=11 // pred_region
        %p154 = scmp.lt.s32.totalorder %s19, 0
        %s155 = scalar_select %p154, %s19, 0
        %s156 = scalar_lea.vmem %s2, %s155
      $region20: #{tpu_custom_call.1} parent=11 // pred_fallthru
        _
    $region12: #{tpu_custom_call.1} parent=5 // pred_fallthru
      _
    %p157 = scmp.lt.s32.totalorder %s9, 2
    // Predicated region
    $region21: #{tpu_custom_call.1} parent=5 // pred_check
      %p158 = pneg %p157
    $region22: #{tpu_custom_call.1} parent=5 // pred_check_branch
      %160 = sbr.rel (%p158) target = $region24
    $region23: #{tpu_custom_call.1} parent=5 // pred_region
      // Predicated region
      $region25: #{tpu_custom_call.1} parent=23 // pred_check
        %p161 = pneg %p43
      $region26: #{tpu_custom_call.1} parent=23 // pred_check_branch
        %163 = sbr.rel (%p161) target = $region28
      $region27: #{tpu_custom_call.1} parent=23 // pred_region
        %p164 = scmp.lt.s32.totalorder %s16, 1
        %s165 = scalar_select %p164, %s16, 1
        %p166 = scmp.lt.s32.totalorder %s17, 0
        %s167 = scalar_select %p166, %s17, 0
        %s168 = smul.addr %s165, 32
        %s169 = sadd.s32 %s167, %s168
        %s170 = smul.addr %s169, 8
        %s171 = scalar_lea.vmem %s0, %s170
      $region28: #{tpu_custom_call.1} parent=23 // pred_fallthru
        _
    $region24: #{tpu_custom_call.1} parent=5 // pred_fallthru
      _
    %p172 = scmp.le.s32.totalorder 1, %s9
    %p173 = scmp.lt.s32.totalorder %s9, 3
    %p174 = pnand %p172, %p173
    %p175 = pneg %p174
    // Predicated region
    $region29: #{tpu_custom_call.1} parent=5 // pred_check
      _
    $region30: #{tpu_custom_call.1} parent=5 // pred_check_branch
      %177 = sbr.rel (%p174) target = $region32
    $region31: #{tpu_custom_call.1} parent=5 // pred_region
      %s178 = ssub.s32 %s9, 1
      %p179 = scmp.lt.s32.totalorder %s18, 1
      %s180 = scalar_select %p179, %s18, 1
      %p181 = scmp.lt.s32.totalorder %s19, 0
      %s182 = scalar_select %p181, %s19, 0
      %s183 = smul.addr %s180, 32
      %s184 = sadd.s32 %s182, %s183
      %s185 = smul.addr %s184, 8
      %s186 = scalar_lea.vmem %s0, %s185
      %p187 = pneg %p49
      %p188 = pneg %p46
      %p189 = scmp.lt.s32.totalorder %s19, 0
      %s190 = scalar_select %p189, %s19, 0
      %s191 = smul.addr %s190, 8
      %s192 = scalar_lea.vmem %s1, %s191
      %p193 = pneg %p75
      %p194 = pneg %p72
      %p195 = scmp.lt.s32.totalorder %s19, 0
      %s196 = scalar_select %p195, %s19, 0
      %s197 = scalar_lea.vmem %s2, %s196
      %p198 = pneg %p101
      %p199 = pneg %p98
      %p200 = pneg %p129
      %p201 = pneg %p126
      %p202 = scmp.lt.s32.totalorder %s18, 1
      %s203 = scalar_select %p202, %s18, 1
      %p204 = scmp.lt.s32.totalorder %s19, 0
      %s205 = scalar_select %p204, %s19, 0
      %s206 = smul.addr %s203, 51
      %s207 = sadd.s32 %s205, %s206
      %s208 = smul.addr %s207, 8
      %s209 = scalar_lea.vmem %s3, %s208
      %p210 = scmp.lt.s32.totalorder %s18, 1
      %s211 = scalar_select %p210, %s18, 1
      %p212 = scmp.lt.s32.totalorder %s19, 0
      %s213 = scalar_select %p212, %s19, 0
      %s214 = smul.addr %s211, 32
      %s215 = sadd.s32 %s213, %s214
      %s216 = smul.addr %s215, 8
      %s217 = scalar_lea.vmem %s0, %s216
      %p218 = scmp.lt.s32.totalorder %s19, 0
      %s219 = scalar_select %p218, %s19, 0
      %s220 = smul.addr %s219, 8
      %s221 = scalar_lea.vmem %s1, %s220
      %p222 = scmp.lt.s32.totalorder %s19, 0
      %s223 = scalar_select %p222, %s19, 0
      %s224 = scalar_lea.vmem %s2, %s223
      %p225 = scmp.lt.s32.totalorder %s18, 1
      %s226 = scalar_select %p225, %s18, 1
      %p227 = scmp.lt.s32.totalorder %s19, 0
      %s228 = scalar_select %p227, %s19, 0
      %s229 = smul.addr %s226, 51
      %s230 = sadd.s32 %s228, %s229
      %s231 = smul.addr %s230, 8
      %s232 = scalar_lea.vmem %s3, %s231
      %vm233 = vcmask 31744
      %234 = vst.msk [vmem:[#allocation2] sm:$0xff] %vm233, 0.0
      %235 = vst.msk [vmem:[#allocation2 + $0x8] sm:$0xff] %vm233, 0.0
      %236 = vst.msk [vmem:[#allocation2 + $0x10] sm:$0xff] %vm233, 0.0
      %vm237 = vcmask 25600
      %238 = vst.msk [vmem:[#allocation2 + $0x18] sm:$0x3] %vm237, 0.0
      %239 = vst.msk [vmem:[#allocation2 + $0x20] sm:$0xff] %vm233, 0.0
      %240 = vst.msk [vmem:[#allocation2 + $0x28] sm:$0xff] %vm233, 0.0
      %241 = vst.msk [vmem:[#allocation2 + $0x30] sm:$0xff] %vm233, 0.0
      %242 = vst.msk [vmem:[#allocation2 + $0x38] sm:$0x3] %vm237, 0.0
      %s243 = scalar_lea.vmem [#allocation2], 576
      %244 = vst.msk [vmem:[%s243] sm:$0xff] %vm233, 0.0
      %245 = vst.msk [vmem:[%s243 + $0x8] sm:$0xff] %vm233, 0.0
      %246 = vst.msk [vmem:[%s243 + $0x10] sm:$0xff] %vm233, 0.0
      %247 = vst.msk [vmem:[%s243 + $0x18] sm:$0x3] %vm237, 0.0
      %248 = vst.msk [vmem:[%s243 + $0x20] sm:$0xff] %vm233, 0.0
      %249 = vst.msk [vmem:[%s243 + $0x28] sm:$0xff] %vm233, 0.0
      %250 = vst.msk [vmem:[%s243 + $0x30] sm:$0xff] %vm233, 0.0
      %251 = vst.msk [vmem:[%s243 + $0x38] sm:$0x3] %vm237, 0.0
      %s252 = scalar_lea.vmem [#allocation2], 64
      %253 = vst.msk [vmem:[%s252] sm:$0xff] %vm233, 0.0
      %254 = vst.msk [vmem:[%s252 + $0x20] sm:$0xff] %vm233, 0.0
      %255 = vst.msk [vmem:[%s252 + $0x40] sm:$0xff] %vm233, 0.0
      %256 = vst.msk [vmem:[%s252 + $0x60] sm:$0xff] %vm233, 0.0
      %257 = vst.msk [vmem:[%s252 + $0x80] sm:$0xff] %vm233, 0.0
      %258 = vst.msk [vmem:[%s252 + $0xa0] sm:$0xff] %vm233, 0.0
      %259 = vst.msk [vmem:[%s252 + $0xc0] sm:$0xff] %vm233, 0.0
      %260 = vst.msk [vmem:[%s252 + $0xe0] sm:$0xff] %vm233, 0.0
      %261 = vst.msk [vmem:[%s252 + $0x100] sm:$0xff] %vm233, 0.0
      %262 = vst.msk [vmem:[%s252 + $0x120] sm:$0xff] %vm233, 0.0
      %263 = vst.msk [vmem:[%s252 + $0x140] sm:$0xff] %vm233, 0.0
      %264 = vst.msk [vmem:[%s252 + $0x160] sm:$0xff] %vm233, 0.0
      %265 = vst.msk [vmem:[%s252 + $0x180] sm:$0xff] %vm233, 0.0
      %266 = vst.msk [vmem:[%s252 + $0x1a0] sm:$0xff] %vm233, 0.0
      %267 = vst.msk [vmem:[%s252 + $0x1c0] sm:$0xff] %vm233, 0.0
      %268 = vst.msk [vmem:[%s252 + $0x1e0] sm:$0xff] %vm233, 0.0
      %269 = vst.msk [vmem:[%s252 + $0x18] sm:$0x3] %vm237, 0.0
      %270 = vst.msk [vmem:[%s252 + $0x38] sm:$0x3] %vm237, 0.0
      %271 = vst.msk [vmem:[%s252 + $0x58] sm:$0x3] %vm237, 0.0
      %272 = vst.msk [vmem:[%s252 + $0x78] sm:$0x3] %vm237, 0.0
      %273 = vst.msk [vmem:[%s252 + $0x98] sm:$0x3] %vm237, 0.0
      %274 = vst.msk [vmem:[%s252 + $0xb8] sm:$0x3] %vm237, 0.0
      %275 = vst.msk [vmem:[%s252 + $0xd8] sm:$0x3] %vm237, 0.0
      %276 = vst.msk [vmem:[%s252 + $0xf8] sm:$0x3] %vm237, 0.0
      %277 = vst.msk [vmem:[%s252 + $0x118] sm:$0x3] %vm237, 0.0
      %278 = vst.msk [vmem:[%s252 + $0x138] sm:$0x3] %vm237, 0.0
      %279 = vst.msk [vmem:[%s252 + $0x158] sm:$0x3] %vm237, 0.0
      %280 = vst.msk [vmem:[%s252 + $0x178] sm:$0x3] %vm237, 0.0
      %281 = vst.msk [vmem:[%s252 + $0x198] sm:$0x3] %vm237, 0.0
      %282 = vst.msk [vmem:[%s252 + $0x1b8] sm:$0x3] %vm237, 0.0
      %283 = vst.msk [vmem:[%s252 + $0x1d8] sm:$0x3] %vm237, 0.0
      %284 = vst.msk [vmem:[%s252 + $0x1f8] sm:$0x3] %vm237, 0.0
      %v285 = vld [vmem:[%s217] sm:$0xff]
      %v286 = vld [vmem:[%s217 + $0x8] sm:$0xff]
      %v287 = vld [vmem:[%s217 + $0x10] sm:$0xff]
      %v288 = vld [vmem:[%s217 + $0x18] sm:$0xff]
      %v289 = vld [vmem:[%s217 + $0x20] sm:$0xff]
      %v290 = vld [vmem:[%s217 + $0x28] sm:$0xff]
      %v291 = vld [vmem:[%s217 + $0x30] sm:$0xff]
      %v292 = vld [vmem:[%s217 + $0x38] sm:$0xff]
      %v293 = vld [vmem:[%s217 + $0x40] sm:$0xff]
      %v294 = vld [vmem:[%s217 + $0x48] sm:$0xff]
      %v295 = vld [vmem:[%s217 + $0x50] sm:$0xff]
      %v296 = vld [vmem:[%s217 + $0x58] sm:$0xff]
      %v297 = vld [vmem:[%s217 + $0x60] sm:$0xff]
      %v298 = vld [vmem:[%s217 + $0x68] sm:$0xff]
      %v299 = vld [vmem:[%s217 + $0x70] sm:$0xff]
      %v300 = vld [vmem:[%s217 + $0x78] sm:$0xff]
      %v301 = vld [vmem:[%s217 + $0x80] sm:$0xff]
      %v302 = vld [vmem:[%s217 + $0x88] sm:$0xff]
      %v303 = vld [vmem:[%s217 + $0x90] sm:$0xff]
      %v304 = vld [vmem:[%s217 + $0x98] sm:$0xff]
      %v305 = vld [vmem:[%s217 + $0xa0] sm:$0xff]
      %v306 = vld [vmem:[%s217 + $0xa8] sm:$0xff]
      %v307 = vld [vmem:[%s217 + $0xb0] sm:$0xff]
      %v308 = vld [vmem:[%s217 + $0xb8] sm:$0xff]
      %v309 = vld [vmem:[%s217 + $0xc0] sm:$0xff]
      %v310 = vld [vmem:[%s217 + $0xc8] sm:$0xff]
      %v311 = vld [vmem:[%s217 + $0xd0] sm:$0xff]
      %v312 = vld [vmem:[%s217 + $0xd8] sm:$0xff]
      %v313 = vld [vmem:[%s217 + $0xe0] sm:$0xff]
      %v314 = vld [vmem:[%s217 + $0xe8] sm:$0xff]
      %v315 = vld [vmem:[%s217 + $0xf0] sm:$0xff]
      %v316 = vld [vmem:[%s217 + $0xf8] sm:$0xff]
      %317 = vst.msk [vmem:[%s252 + $0x8] sm:$0xff] %vm233, %v285
      %318 = vst.msk [vmem:[%s252 + $0x10] sm:$0xff] %vm233, %v286
      %319 = vst.msk [vmem:[%s252 + $0x28] sm:$0xff] %vm233, %v287
      %320 = vst.msk [vmem:[%s252 + $0x30] sm:$0xff] %vm233, %v288
      %321 = vst.msk [vmem:[%s252 + $0x48] sm:$0xff] %vm233, %v289
      %322 = vst.msk [vmem:[%s252 + $0x50] sm:$0xff] %vm233, %v290
      %323 = vst.msk [vmem:[%s252 + $0x68] sm:$0xff] %vm233, %v291
      %324 = vst.msk [vmem:[%s252 + $0x70] sm:$0xff] %vm233, %v292
      %325 = vst.msk [vmem:[%s252 + $0x88] sm:$0xff] %vm233, %v293
      %326 = vst.msk [vmem:[%s252 + $0x90] sm:$0xff] %vm233, %v294
      %327 = vst.msk [vmem:[%s252 + $0xa8] sm:$0xff] %vm233, %v295
      %328 = vst.msk [vmem:[%s252 + $0xb0] sm:$0xff] %vm233, %v296
      %329 = vst.msk [vmem:[%s252 + $0xc8] sm:$0xff] %vm233, %v297
      %330 = vst.msk [vmem:[%s252 + $0xd0] sm:$0xff] %vm233, %v298
      %331 = vst.msk [vmem:[%s252 + $0xe8] sm:$0xff] %vm233, %v299
      %332 = vst.msk [vmem:[%s252 + $0xf0] sm:$0xff] %vm233, %v300
      %333 = vst.msk [vmem:[%s252 + $0x108] sm:$0xff] %vm233, %v301
      %334 = vst.msk [vmem:[%s252 + $0x110] sm:$0xff] %vm233, %v302
      %335 = vst.msk [vmem:[%s252 + $0x128] sm:$0xff] %vm233, %v303
      %336 = vst.msk [vmem:[%s252 + $0x130] sm:$0xff] %vm233, %v304
      %337 = vst.msk [vmem:[%s252 + $0x148] sm:$0xff] %vm233, %v305
      %338 = vst.msk [vmem:[%s252 + $0x150] sm:$0xff] %vm233, %v306
      %339 = vst.msk [vmem:[%s252 + $0x168] sm:$0xff] %vm233, %v307
      %340 = vst.msk [vmem:[%s252 + $0x170] sm:$0xff] %vm233, %v308
      %341 = vst.msk [vmem:[%s252 + $0x188] sm:$0xff] %vm233, %v309
      %342 = vst.msk [vmem:[%s252 + $0x190] sm:$0xff] %vm233, %v310
      %343 = vst.msk [vmem:[%s252 + $0x1a8] sm:$0xff] %vm233, %v311
      %344 = vst.msk [vmem:[%s252 + $0x1b0] sm:$0xff] %vm233, %v312
      %345 = vst.msk [vmem:[%s252 + $0x1c8] sm:$0xff] %vm233, %v313
      %346 = vst.msk [vmem:[%s252 + $0x1d0] sm:$0xff] %vm233, %v314
      %347 = vst.msk [vmem:[%s252 + $0x1e8] sm:$0xff] %vm233, %v315
      %348 = vst.msk [vmem:[%s252 + $0x1f0] sm:$0xff] %vm233, %v316
      %v349 = vld [vmem:[%s221] sm:$0x1]
      %v350 = vld [vmem:[%s221 + $0x1] sm:$0x1]
      %v351 = vld [vmem:[%s221 + $0x2] sm:$0x1]
      %v352 = vld [vmem:[%s221 + $0x3] sm:$0x1]
      %v353 = vld [vmem:[%s221 + $0x4] sm:$0x1]
      %v354 = vld [vmem:[%s221 + $0x5] sm:$0x1]
      %v355 = vld [vmem:[%s221 + $0x6] sm:$0x1]
      %v356 = vld [vmem:[%s221 + $0x7] sm:$0x1]
      %v357 = vld [vmem:[%s221 + $0x8] sm:$0x1]
      %v358 = vld [vmem:[%s221 + $0x9] sm:$0x1]
      %v359 = vld [vmem:[%s221 + $0xa] sm:$0x1]
      %v360 = vld [vmem:[%s221 + $0xb] sm:$0x1]
      %v361 = vld [vmem:[%s221 + $0xc] sm:$0x1]
      %v362 = vld [vmem:[%s221 + $0xd] sm:$0x1]
      %v363 = vld [vmem:[%s221 + $0xe] sm:$0x1]
      %v364 = vld [vmem:[%s221 + $0xf] sm:$0x1]
      %v365 = vld [vmem:[%s224] sm:$0x1]
      loop: start=0, step=1, limit=3
      $region33: #{tpu_custom_call.1} parent=31 // loop_pre_header
        _
      $region34: #{tpu_custom_call.1} parent=31 // loop_header
        %s367 = sphi 0, %s371
        %p368 = scmp.ge.s32.totalorder %s367, 3
      $region35: #{tpu_custom_call.1} parent=31 // loop_header_branch
        %370 = sbr.rel (%p368) target = $region39
      $region36: #{tpu_custom_call.1} parent=31 // loop_body
        %s372 = smul.u32 %s367, 5
        %s373 = smul.u32 %s372, 32
        %s374 = scalar_lea.vmem [#allocation2], %s373
        %v375 = vld [vmem:[%s374] sm:$0xff]
        %v376 = vld [vmem:[%s374 + $0x8] sm:$0xff]
        %v377 = vld [vmem:[%s374 + $0x10] sm:$0xff]
        %v378 = vld [vmem:[%s374 + $0x18] sm:$0x3]
        %v379 = vld [vmem:[%s374 + $0x20] sm:$0xff]
        %v380 = vld [vmem:[%s374 + $0x28] sm:$0xff]
        %v381 = vld [vmem:[%s374 + $0x30] sm:$0xff]
        %v382 = vld [vmem:[%s374 + $0x38] sm:$0x3]
        %v383 = vld [vmem:[%s374 + $0x40] sm:$0xff]
        %v384 = vld [vmem:[%s374 + $0x48] sm:$0xff]
        %v385 = vld [vmem:[%s374 + $0x50] sm:$0xff]
        %v386 = vld [vmem:[%s374 + $0x58] sm:$0x3]
        %v387 = vld [vmem:[%s374 + $0x60] sm:$0xff]
        %v388 = vld [vmem:[%s374 + $0x68] sm:$0xff]
        %v389 = vld [vmem:[%s374 + $0x70] sm:$0xff]
        %v390 = vld [vmem:[%s374 + $0x78] sm:$0x3]
        %v391 = vld [vmem:[%s374 + $0x80] sm:$0xff]
        %v392 = vld [vmem:[%s374 + $0x88] sm:$0xff]
        %v393 = vld [vmem:[%s374 + $0x90] sm:$0xff]
        %v394 = vld [vmem:[%s374 + $0x98] sm:$0x3]
        %v395 = vperm.slane %v349, 0
        %v396 = vmul.f32 %v375, %v395
        %v397 = vmul.f32 %v376, %v395
        %v398 = vmul.f32 %v377, %v395
        %v399 = vmul.f32 %v379, %v395
        %v400 = vmul.f32 %v380, %v395
        %v401 = vmul.f32 %v381, %v395
        %v402 = vmul.f32 %v383, %v395
        %v403 = vmul.f32 %v384, %v395
        %v404 = vmul.f32 %v385, %v395
        %v405 = vmul.f32 %v387, %v395
        %v406 = vmul.f32 %v388, %v395
        %v407 = vmul.f32 %v389, %v395
        %v408 = vmul.f32 %v391, %v395
        %v409 = vmul.f32 %v392, %v395
        %v410 = vmul.f32 %v393, %v395
        %v411 = vadd.f32 %v396, 0.0
        %v412 = vadd.f32 %v397, 0.0
        %v413 = vadd.f32 %v398, 0.0
        %v414 = vadd.f32 %v399, 0.0
        %v415 = vadd.f32 %v400, 0.0
        %v416 = vadd.f32 %v401, 0.0
        %v417 = vadd.f32 %v402, 0.0
        %v418 = vadd.f32 %v403, 0.0
        %v419 = vadd.f32 %v404, 0.0
        %v420 = vadd.f32 %v405, 0.0
        %v421 = vadd.f32 %v406, 0.0
        %v422 = vadd.f32 %v407, 0.0
        %v423 = vadd.f32 %v408, 0.0
        %v424 = vadd.f32 %v409, 0.0
        %v425 = vadd.f32 %v410, 0.0
        %v426 = vperm.slane %v350, 0
        %v427 = vmul.f32 %v375, %v426
        %v428 = vmul.f32 %v376, %v426
        %v429 = vmul.f32 %v377, %v426
        %v430 = vmul.f32 %v379, %v426
        %v431 = vmul.f32 %v380, %v426
        %v432 = vmul.f32 %v381, %v426
        %v433 = vmul.f32 %v383, %v426
        %v434 = vmul.f32 %v384, %v426
        %v435 = vmul.f32 %v385, %v426
        %v436 = vmul.f32 %v387, %v426
        %v437 = vmul.f32 %v388, %v426
        %v438 = vmul.f32 %v389, %v426
        %v439 = vmul.f32 %v391, %v426
        %v440 = vmul.f32 %v392, %v426
        %v441 = vmul.f32 %v393, %v426
        %vm457 = vcmask 1046528
        %v458 = vrot.slane %v427, 1
        %v459 = vrot.slane %v428, 1
        %v460 = vsel %vm457, %v458, %v459
        %v461 = vrot.slane %v429, 1
        %v462 = vsel %vm457, %v459, %v461
        %v463 = vrot.slane %v430, 1
        %v464 = vrot.slane %v431, 1
        %v465 = vsel %vm457, %v463, %v464
        %v466 = vrot.slane %v432, 1
        %v467 = vsel %vm457, %v464, %v466
        %v468 = vrot.slane %v433, 1
        %v469 = vrot.slane %v434, 1
        %v470 = vsel %vm457, %v468, %v469
        %v471 = vrot.slane %v435, 1
        %v472 = vsel %vm457, %v469, %v471
        %v473 = vrot.slane %v436, 1
        %v474 = vrot.slane %v437, 1
        %v475 = vsel %vm457, %v473, %v474
        %v476 = vrot.slane %v438, 1
        %v477 = vsel %vm457, %v474, %v476
        %v478 = vrot.slane %v439, 1
        %v479 = vrot.slane %v440, 1
        %v480 = vsel %vm457, %v478, %v479
        %v481 = vrot.slane %v441, 1
        %v482 = vsel %vm457, %v479, %v481
        %v498 = vadd.f32 %v411, %v460
        %v499 = vadd.f32 %v412, %v462
        %v500 = vadd.f32 %v413, %v461
        %v501 = vadd.f32 %v414, %v465
        %v502 = vadd.f32 %v415, %v467
        %v503 = vadd.f32 %v416, %v466
        %v504 = vadd.f32 %v417, %v470
        %v505 = vadd.f32 %v418, %v472
        %v506 = vadd.f32 %v419, %v471
        %v507 = vadd.f32 %v420, %v475
        %v508 = vadd.f32 %v421, %v477
        %v509 = vadd.f32 %v422, %v476
        %v510 = vadd.f32 %v423, %v480
        %v511 = vadd.f32 %v424, %v482
        %v512 = vadd.f32 %v425, %v481
        %v513 = vperm.slane %v351, 0
        %v514 = vmul.f32 %v376, %v513
        %v515 = vmul.f32 %v377, %v513
        %v516 = vmul.f32 %v378, %v513
        %v517 = vmul.f32 %v380, %v513
        %v518 = vmul.f32 %v381, %v513
        %v519 = vmul.f32 %v382, %v513
        %v520 = vmul.f32 %v384, %v513
        %v521 = vmul.f32 %v385, %v513
        %v522 = vmul.f32 %v386, %v513
        %v523 = vmul.f32 %v388, %v513
        %v524 = vmul.f32 %v389, %v513
        %v525 = vmul.f32 %v390, %v513
        %v526 = vmul.f32 %v392, %v513
        %v527 = vmul.f32 %v393, %v513
        %v528 = vmul.f32 %v394, %v513
        %vm544 = vcmask 1045504
        %v545 = vrot.slane %v514, 2
        %v546 = vrot.slane %v515, 2
        %v547 = vsel %vm544, %v545, %v546
        %v548 = vrot.slane %v516, 2
        %v549 = vsel %vm544, %v546, %v548
        %v550 = vrot.slane %v517, 2
        %v551 = vrot.slane %v518, 2
        %v552 = vsel %vm544, %v550, %v551
        %v553 = vrot.slane %v519, 2
        %v554 = vsel %vm544, %v551, %v553
        %v555 = vrot.slane %v520, 2
        %v556 = vrot.slane %v521, 2
        %v557 = vsel %vm544, %v555, %v556
        %v558 = vrot.slane %v522, 2
        %v559 = vsel %vm544, %v556, %v558
        %v560 = vrot.slane %v523, 2
        %v561 = vrot.slane %v524, 2
        %v562 = vsel %vm544, %v560, %v561
        %v563 = vrot.slane %v525, 2
        %v564 = vsel %vm544, %v561, %v563
        %v565 = vrot.slane %v526, 2
        %v566 = vrot.slane %v527, 2
        %v567 = vsel %vm544, %v565, %v566
        %v568 = vrot.slane %v528, 2
        %v569 = vsel %vm544, %v566, %v568
        %v585 = vadd.f32 %v498, %v545
        %v586 = vadd.f32 %v499, %v547
        %v587 = vadd.f32 %v500, %v549
        %v588 = vadd.f32 %v501, %v550
        %v589 = vadd.f32 %v502, %v552
        %v590 = vadd.f32 %v503, %v554
        %v591 = vadd.f32 %v504, %v555
        %v592 = vadd.f32 %v505, %v557
        %v593 = vadd.f32 %v506, %v559
        %v594 = vadd.f32 %v507, %v560
        %v595 = vadd.f32 %v508, %v562
        %v596 = vadd.f32 %v509, %v564
        %v597 = vadd.f32 %v510, %v565
        %v598 = vadd.f32 %v511, %v567
        %v599 = vadd.f32 %v512, %v569
        %v600 = vperm.slane %v352, 0
        %v601 = vmul.f32 %v376, %v600
        %v602 = vmul.f32 %v377, %v600
        %v603 = vmul.f32 %v378, %v600
        %v604 = vmul.f32 %v380, %v600
        %v605 = vmul.f32 %v381, %v600
        %v606 = vmul.f32 %v382, %v600
        %v607 = vmul.f32 %v384, %v600
        %v608 = vmul.f32 %v385, %v600
        %v609 = vmul.f32 %v386, %v600
        %v610 = vmul.f32 %v388, %v600
        %v611 = vmul.f32 %v389, %v600
        %v612 = vmul.f32 %v390, %v600
        %v613 = vmul.f32 %v392, %v600
        %v614 = vmul.f32 %v393, %v600
        %v615 = vmul.f32 %v394, %v600
        %vm631 = vcmask 1044480
        %v632 = vrot.slane %v601, 3
        %v633 = vrot.slane %v602, 3
        %v634 = vsel %vm631, %v632, %v633
        %v635 = vrot.slane %v603, 3
        %v636 = vsel %vm631, %v633, %v635
        %v637 = vrot.slane %v604, 3
        %v638 = vrot.slane %v605, 3
        %v639 = vsel %vm631, %v637, %v638
        %v640 = vrot.slane %v606, 3
        %v641 = vsel %vm631, %v638, %v640
        %v642 = vrot.slane %v607, 3
        %v643 = vrot.slane %v608, 3
        %v644 = vsel %vm631, %v642, %v643
        %v645 = vrot.slane %v609, 3
        %v646 = vsel %vm631, %v643, %v645
        %v647 = vrot.slane %v610, 3
        %v648 = vrot.slane %v611, 3
        %v649 = vsel %vm631, %v647, %v648
        %v650 = vrot.slane %v612, 3
        %v651 = vsel %vm631, %v648, %v650
        %v652 = vrot.slane %v613, 3
        %v653 = vrot.slane %v614, 3
        %v654 = vsel %vm631, %v652, %v653
        %v655 = vrot.slane %v615, 3
        %v656 = vsel %vm631, %v653, %v655
        %v672 = vadd.f32 %v585, %v632
        %v673 = vadd.f32 %v586, %v634
        %v674 = vadd.f32 %v587, %v636
        %v675 = vadd.f32 %v588, %v637
        %v676 = vadd.f32 %v589, %v639
        %v677 = vadd.f32 %v590, %v641
        %v678 = vadd.f32 %v591, %v642
        %v679 = vadd.f32 %v592, %v644
        %v680 = vadd.f32 %v593, %v646
        %v681 = vadd.f32 %v594, %v647
        %v682 = vadd.f32 %v595, %v649
        %v683 = vadd.f32 %v596, %v651
        %v684 = vadd.f32 %v597, %v652
        %v685 = vadd.f32 %v598, %v654
        %v686 = vadd.f32 %v599, %v656
        %s687 = sadd.s32 %s372, 1
        %s688 = smul.u32 %s687, 32
        %s689 = scalar_lea.vmem [#allocation2], %s688
        %v690 = vld [vmem:[%s689] sm:$0xff]
        %v691 = vld [vmem:[%s689 + $0x8] sm:$0xff]
        %v692 = vld [vmem:[%s689 + $0x10] sm:$0xff]
        %v693 = vld [vmem:[%s689 + $0x18] sm:$0x3]
        %v694 = vld [vmem:[%s689 + $0x20] sm:$0xff]
        %v695 = vld [vmem:[%s689 + $0x28] sm:$0xff]
        %v696 = vld [vmem:[%s689 + $0x30] sm:$0xff]
        %v697 = vld [vmem:[%s689 + $0x38] sm:$0x3]
        %v698 = vld [vmem:[%s689 + $0x40] sm:$0xff]
        %v699 = vld [vmem:[%s689 + $0x48] sm:$0xff]
        %v700 = vld [vmem:[%s689 + $0x50] sm:$0xff]
        %v701 = vld [vmem:[%s689 + $0x58] sm:$0x3]
        %v702 = vld [vmem:[%s689 + $0x60] sm:$0xff]
        %v703 = vld [vmem:[%s689 + $0x68] sm:$0xff]
        %v704 = vld [vmem:[%s689 + $0x70] sm:$0xff]
        %v705 = vld [vmem:[%s689 + $0x78] sm:$0x3]
        %v706 = vld [vmem:[%s689 + $0x80] sm:$0xff]
        %v707 = vld [vmem:[%s689 + $0x88] sm:$0xff]
        %v708 = vld [vmem:[%s689 + $0x90] sm:$0xff]
        %v709 = vld [vmem:[%s689 + $0x98] sm:$0x3]
        %v710 = vperm.slane %v353, 0
        %v711 = vmul.f32 %v690, %v710
        %v712 = vmul.f32 %v691, %v710
        %v713 = vmul.f32 %v692, %v710
        %v714 = vmul.f32 %v694, %v710
        %v715 = vmul.f32 %v695, %v710
        %v716 = vmul.f32 %v696, %v710
        %v717 = vmul.f32 %v698, %v710
        %v718 = vmul.f32 %v699, %v710
        %v719 = vmul.f32 %v700, %v710
        %v720 = vmul.f32 %v702, %v710
        %v721 = vmul.f32 %v703, %v710
        %v722 = vmul.f32 %v704, %v710
        %v723 = vmul.f32 %v706, %v710
        %v724 = vmul.f32 %v707, %v710
        %v725 = vmul.f32 %v708, %v710
        %v726 = vadd.f32 %v672, %v711
        %v727 = vadd.f32 %v673, %v712
        %v728 = vadd.f32 %v674, %v713
        %v729 = vadd.f32 %v675, %v714
        %v730 = vadd.f32 %v676, %v715
        %v731 = vadd.f32 %v677, %v716
        %v732 = vadd.f32 %v678, %v717
        %v733 = vadd.f32 %v679, %v718
        %v734 = vadd.f32 %v680, %v719
        %v735 = vadd.f32 %v681, %v720
        %v736 = vadd.f32 %v682, %v721
        %v737 = vadd.f32 %v683, %v722
        %v738 = vadd.f32 %v684, %v723
        %v739 = vadd.f32 %v685, %v724
        %v740 = vadd.f32 %v686, %v725
        %v741 = vperm.slane %v354, 0
        %v742 = vmul.f32 %v690, %v741
        %v743 = vmul.f32 %v691, %v741
        %v744 = vmul.f32 %v692, %v741
        %v745 = vmul.f32 %v694, %v741
        %v746 = vmul.f32 %v695, %v741
        %v747 = vmul.f32 %v696, %v741
        %v748 = vmul.f32 %v698, %v741
        %v749 = vmul.f32 %v699, %v741
        %v750 = vmul.f32 %v700, %v741
        %v751 = vmul.f32 %v702, %v741
        %v752 = vmul.f32 %v703, %v741
        %v753 = vmul.f32 %v704, %v741
        %v754 = vmul.f32 %v706, %v741
        %v755 = vmul.f32 %v707, %v741
        %v756 = vmul.f32 %v708, %v741
        %v772 = vrot.slane %v742, 1
        %v773 = vrot.slane %v743, 1
        %v774 = vsel %vm457, %v772, %v773
        %v775 = vrot.slane %v744, 1
        %v776 = vsel %vm457, %v773, %v775
        %v777 = vrot.slane %v745, 1
        %v778 = vrot.slane %v746, 1
        %v779 = vsel %vm457, %v777, %v778
        %v780 = vrot.slane %v747, 1
        %v781 = vsel %vm457, %v778, %v780
        %v782 = vrot.slane %v748, 1
        %v783 = vrot.slane %v749, 1
        %v784 = vsel %vm457, %v782, %v783
        %v785 = vrot.slane %v750, 1
        %v786 = vsel %vm457, %v783, %v785
        %v787 = vrot.slane %v751, 1
        %v788 = vrot.slane %v752, 1
        %v789 = vsel %vm457, %v787, %v788
        %v790 = vrot.slane %v753, 1
        %v791 = vsel %vm457, %v788, %v790
        %v792 = vrot.slane %v754, 1
        %v793 = vrot.slane %v755, 1
        %v794 = vsel %vm457, %v792, %v793
        %v795 = vrot.slane %v756, 1
        %v796 = vsel %vm457, %v793, %v795
        %v812 = vadd.f32 %v726, %v774
        %v813 = vadd.f32 %v727, %v776
        %v814 = vadd.f32 %v728, %v775
        %v815 = vadd.f32 %v729, %v779
        %v816 = vadd.f32 %v730, %v781
        %v817 = vadd.f32 %v731, %v780
        %v818 = vadd.f32 %v732, %v784
        %v819 = vadd.f32 %v733, %v786
        %v820 = vadd.f32 %v734, %v785
        %v821 = vadd.f32 %v735, %v789
        %v822 = vadd.f32 %v736, %v791
        %v823 = vadd.f32 %v737, %v790
        %v824 = vadd.f32 %v738, %v794
        %v825 = vadd.f32 %v739, %v796
        %v826 = vadd.f32 %v740, %v795
        %v827 = vperm.slane %v355, 0
        %v828 = vmul.f32 %v691, %v827
        %v829 = vmul.f32 %v692, %v827
        %v830 = vmul.f32 %v693, %v827
        %v831 = vmul.f32 %v695, %v827
        %v832 = vmul.f32 %v696, %v827
        %v833 = vmul.f32 %v697, %v827
        %v834 = vmul.f32 %v699, %v827
        %v835 = vmul.f32 %v700, %v827
        %v836 = vmul.f32 %v701, %v827
        %v837 = vmul.f32 %v703, %v827
        %v838 = vmul.f32 %v704, %v827
        %v839 = vmul.f32 %v705, %v827
        %v840 = vmul.f32 %v707, %v827
        %v841 = vmul.f32 %v708, %v827
        %v842 = vmul.f32 %v709, %v827
        %v858 = vrot.slane %v828, 2
        %v859 = vrot.slane %v829, 2
        %v860 = vsel %vm544, %v858, %v859
        %v861 = vrot.slane %v830, 2
        %v862 = vsel %vm544, %v859, %v861
        %v863 = vrot.slane %v831, 2
        %v864 = vrot.slane %v832, 2
        %v865 = vsel %vm544, %v863, %v864
        %v866 = vrot.slane %v833, 2
        %v867 = vsel %vm544, %v864, %v866
        %v868 = vrot.slane %v834, 2
        %v869 = vrot.slane %v835, 2
        %v870 = vsel %vm544, %v868, %v869
        %v871 = vrot.slane %v836, 2
        %v872 = vsel %vm544, %v869, %v871
        %v873 = vrot.slane %v837, 2
        %v874 = vrot.slane %v838, 2
        %v875 = vsel %vm544, %v873, %v874
        %v876 = vrot.slane %v839, 2
        %v877 = vsel %vm544, %v874, %v876
        %v878 = vrot.slane %v840, 2
        %v879 = vrot.slane %v841, 2
        %v880 = vsel %vm544, %v878, %v879
        %v881 = vrot.slane %v842, 2
        %v882 = vsel %vm544, %v879, %v881
        %v898 = vadd.f32 %v812, %v858
        %v899 = vadd.f32 %v813, %v860
        %v900 = vadd.f32 %v814, %v862
        %v901 = vadd.f32 %v815, %v863
        %v902 = vadd.f32 %v816, %v865
        %v903 = vadd.f32 %v817, %v867
        %v904 = vadd.f32 %v818, %v868
        %v905 = vadd.f32 %v819, %v870
        %v906 = vadd.f32 %v820, %v872
        %v907 = vadd.f32 %v821, %v873
        %v908 = vadd.f32 %v822, %v875
        %v909 = vadd.f32 %v823, %v877
        %v910 = vadd.f32 %v824, %v878
        %v911 = vadd.f32 %v825, %v880
        %v912 = vadd.f32 %v826, %v882
        %v913 = vperm.slane %v356, 0
        %v914 = vmul.f32 %v691, %v913
        %v915 = vmul.f32 %v692, %v913
        %v916 = vmul.f32 %v693, %v913
        %v917 = vmul.f32 %v695, %v913
        %v918 = vmul.f32 %v696, %v913
        %v919 = vmul.f32 %v697, %v913
        %v920 = vmul.f32 %v699, %v913
        %v921 = vmul.f32 %v700, %v913
        %v922 = vmul.f32 %v701, %v913
        %v923 = vmul.f32 %v703, %v913
        %v924 = vmul.f32 %v704, %v913
        %v925 = vmul.f32 %v705, %v913
        %v926 = vmul.f32 %v707, %v913
        %v927 = vmul.f32 %v708, %v913
        %v928 = vmul.f32 %v709, %v913
        %v944 = vrot.slane %v914, 3
        %v945 = vrot.slane %v915, 3
        %v946 = vsel %vm631, %v944, %v945
        %v947 = vrot.slane %v916, 3
        %v948 = vsel %vm631, %v945, %v947
        %v949 = vrot.slane %v917, 3
        %v950 = vrot.slane %v918, 3
        %v951 = vsel %vm631, %v949, %v950
        %v952 = vrot.slane %v919, 3
        %v953 = vsel %vm631, %v950, %v952
        %v954 = vrot.slane %v920, 3
        %v955 = vrot.slane %v921, 3
        %v956 = vsel %vm631, %v954, %v955
        %v957 = vrot.slane %v922, 3
        %v958 = vsel %vm631, %v955, %v957
        %v959 = vrot.slane %v923, 3
        %v960 = vrot.slane %v924, 3
        %v961 = vsel %vm631, %v959, %v960
        %v962 = vrot.slane %v925, 3
        %v963 = vsel %vm631, %v960, %v962
        %v964 = vrot.slane %v926, 3
        %v965 = vrot.slane %v927, 3
        %v966 = vsel %vm631, %v964, %v965
        %v967 = vrot.slane %v928, 3
        %v968 = vsel %vm631, %v965, %v967
        %v984 = vadd.f32 %v898, %v944
        %v985 = vadd.f32 %v899, %v946
        %v986 = vadd.f32 %v900, %v948
        %v987 = vadd.f32 %v901, %v949
        %v988 = vadd.f32 %v902, %v951
        %v989 = vadd.f32 %v903, %v953
        %v990 = vadd.f32 %v904, %v954
        %v991 = vadd.f32 %v905, %v956
        %v992 = vadd.f32 %v906, %v958
        %v993 = vadd.f32 %v907, %v959
        %v994 = vadd.f32 %v908, %v961
        %v995 = vadd.f32 %v909, %v963
        %v996 = vadd.f32 %v910, %v964
        %v997 = vadd.f32 %v911, %v966
        %v998 = vadd.f32 %v912, %v968
        %s999 = sadd.s32 %s372, 2
        %s1000 = smul.u32 %s999, 32
        %s1001 = scalar_lea.vmem [#allocation2], %s1000
        %v1002 = vld [vmem:[%s1001] sm:$0xff]
        %v1003 = vld [vmem:[%s1001 + $0x8] sm:$0xff]
        %v1004 = vld [vmem:[%s1001 + $0x10] sm:$0xff]
        %v1005 = vld [vmem:[%s1001 + $0x18] sm:$0x3]
        %v1006 = vld [vmem:[%s1001 + $0x20] sm:$0xff]
        %v1007 = vld [vmem:[%s1001 + $0x28] sm:$0xff]
        %v1008 = vld [vmem:[%s1001 + $0x30] sm:$0xff]
        %v1009 = vld [vmem:[%s1001 + $0x38] sm:$0x3]
        %v1010 = vld [vmem:[%s1001 + $0x40] sm:$0xff]
        %v1011 = vld [vmem:[%s1001 + $0x48] sm:$0xff]
        %v1012 = vld [vmem:[%s1001 + $0x50] sm:$0xff]
        %v1013 = vld [vmem:[%s1001 + $0x58] sm:$0x3]
        %v1014 = vld [vmem:[%s1001 + $0x60] sm:$0xff]
        %v1015 = vld [vmem:[%s1001 + $0x68] sm:$0xff]
        %v1016 = vld [vmem:[%s1001 + $0x70] sm:$0xff]
        %v1017 = vld [vmem:[%s1001 + $0x78] sm:$0x3]
        %v1018 = vld [vmem:[%s1001 + $0x80] sm:$0xff]
        %v1019 = vld [vmem:[%s1001 + $0x88] sm:$0xff]
        %v1020 = vld [vmem:[%s1001 + $0x90] sm:$0xff]
        %v1021 = vld [vmem:[%s1001 + $0x98] sm:$0x3]
        %v1022 = vperm.slane %v357, 0
        %v1023 = vmul.f32 %v1002, %v1022
        %v1024 = vmul.f32 %v1003, %v1022
        %v1025 = vmul.f32 %v1004, %v1022
        %v1026 = vmul.f32 %v1006, %v1022
        %v1027 = vmul.f32 %v1007, %v1022
        %v1028 = vmul.f32 %v1008, %v1022
        %v1029 = vmul.f32 %v1010, %v1022
        %v1030 = vmul.f32 %v1011, %v1022
        %v1031 = vmul.f32 %v1012, %v1022
        %v1032 = vmul.f32 %v1014, %v1022
        %v1033 = vmul.f32 %v1015, %v1022
        %v1034 = vmul.f32 %v1016, %v1022
        %v1035 = vmul.f32 %v1018, %v1022
        %v1036 = vmul.f32 %v1019, %v1022
        %v1037 = vmul.f32 %v1020, %v1022
        %v1038 = vadd.f32 %v984, %v1023
        %v1039 = vadd.f32 %v985, %v1024
        %v1040 = vadd.f32 %v986, %v1025
        %v1041 = vadd.f32 %v987, %v1026
        %v1042 = vadd.f32 %v988, %v1027
        %v1043 = vadd.f32 %v989, %v1028
        %v1044 = vadd.f32 %v990, %v1029
        %v1045 = vadd.f32 %v991, %v1030
        %v1046 = vadd.f32 %v992, %v1031
        %v1047 = vadd.f32 %v993, %v1032
        %v1048 = vadd.f32 %v994, %v1033
        %v1049 = vadd.f32 %v995, %v1034
        %v1050 = vadd.f32 %v996, %v1035
        %v1051 = vadd.f32 %v997, %v1036
        %v1052 = vadd.f32 %v998, %v1037
        %v1053 = vperm.slane %v358, 0
        %v1054 = vmul.f32 %v1002, %v1053
        %v1055 = vmul.f32 %v1003, %v1053
        %v1056 = vmul.f32 %v1004, %v1053
        %v1057 = vmul.f32 %v1006, %v1053
        %v1058 = vmul.f32 %v1007, %v1053
        %v1059 = vmul.f32 %v1008, %v1053
        %v1060 = vmul.f32 %v1010, %v1053
        %v1061 = vmul.f32 %v1011, %v1053
        %v1062 = vmul.f32 %v1012, %v1053
        %v1063 = vmul.f32 %v1014, %v1053
        %v1064 = vmul.f32 %v1015, %v1053
        %v1065 = vmul.f32 %v1016, %v1053
        %v1066 = vmul.f32 %v1018, %v1053
        %v1067 = vmul.f32 %v1019, %v1053
        %v1068 = vmul.f32 %v1020, %v1053
        %v1084 = vrot.slane %v1054, 1
        %v1085 = vrot.slane %v1055, 1
        %v1086 = vsel %vm457, %v1084, %v1085
        %v1087 = vrot.slane %v1056, 1
        %v1088 = vsel %vm457, %v1085, %v1087
        %v1089 = vrot.slane %v1057, 1
        %v1090 = vrot.slane %v1058, 1
        %v1091 = vsel %vm457, %v1089, %v1090
        %v1092 = vrot.slane %v1059, 1
        %v1093 = vsel %vm457, %v1090, %v1092
        %v1094 = vrot.slane %v1060, 1
        %v1095 = vrot.slane %v1061, 1
        %v1096 = vsel %vm457, %v1094, %v1095
        %v1097 = vrot.slane %v1062, 1
        %v1098 = vsel %vm457, %v1095, %v1097
        %v1099 = vrot.slane %v1063, 1
        %v1100 = vrot.slane %v1064, 1
        %v1101 = vsel %vm457, %v1099, %v1100
        %v1102 = vrot.slane %v1065, 1
        %v1103 = vsel %vm457, %v1100, %v1102
        %v1104 = vrot.slane %v1066, 1
        %v1105 = vrot.slane %v1067, 1
        %v1106 = vsel %vm457, %v1104, %v1105
        %v1107 = vrot.slane %v1068, 1
        %v1108 = vsel %vm457, %v1105, %v1107
        %v1124 = vadd.f32 %v1038, %v1086
        %v1125 = vadd.f32 %v1039, %v1088
        %v1126 = vadd.f32 %v1040, %v1087
        %v1127 = vadd.f32 %v1041, %v1091
        %v1128 = vadd.f32 %v1042, %v1093
        %v1129 = vadd.f32 %v1043, %v1092
        %v1130 = vadd.f32 %v1044, %v1096
        %v1131 = vadd.f32 %v1045, %v1098
        %v1132 = vadd.f32 %v1046, %v1097
        %v1133 = vadd.f32 %v1047, %v1101
        %v1134 = vadd.f32 %v1048, %v1103
        %v1135 = vadd.f32 %v1049, %v1102
        %v1136 = vadd.f32 %v1050, %v1106
        %v1137 = vadd.f32 %v1051, %v1108
        %v1138 = vadd.f32 %v1052, %v1107
        %v1139 = vperm.slane %v359, 0
        %v1140 = vmul.f32 %v1003, %v1139
        %v1141 = vmul.f32 %v1004, %v1139
        %v1142 = vmul.f32 %v1005, %v1139
        %v1143 = vmul.f32 %v1007, %v1139
        %v1144 = vmul.f32 %v1008, %v1139
        %v1145 = vmul.f32 %v1009, %v1139
        %v1146 = vmul.f32 %v1011, %v1139
        %v1147 = vmul.f32 %v1012, %v1139
        %v1148 = vmul.f32 %v1013, %v1139
        %v1149 = vmul.f32 %v1015, %v1139
        %v1150 = vmul.f32 %v1016, %v1139
        %v1151 = vmul.f32 %v1017, %v1139
        %v1152 = vmul.f32 %v1019, %v1139
        %v1153 = vmul.f32 %v1020, %v1139
        %v1154 = vmul.f32 %v1021, %v1139
        %v1170 = vrot.slane %v1140, 2
        %v1171 = vrot.slane %v1141, 2
        %v1172 = vsel %vm544, %v1170, %v1171
        %v1173 = vrot.slane %v1142, 2
        %v1174 = vsel %vm544, %v1171, %v1173
        %v1175 = vrot.slane %v1143, 2
        %v1176 = vrot.slane %v1144, 2
        %v1177 = vsel %vm544, %v1175, %v1176
        %v1178 = vrot.slane %v1145, 2
        %v1179 = vsel %vm544, %v1176, %v1178
        %v1180 = vrot.slane %v1146, 2
        %v1181 = vrot.slane %v1147, 2
        %v1182 = vsel %vm544, %v1180, %v1181
        %v1183 = vrot.slane %v1148, 2
        %v1184 = vsel %vm544, %v1181, %v1183
        %v1185 = vrot.slane %v1149, 2
        %v1186 = vrot.slane %v1150, 2
        %v1187 = vsel %vm544, %v1185, %v1186
        %v1188 = vrot.slane %v1151, 2
        %v1189 = vsel %vm544, %v1186, %v1188
        %v1190 = vrot.slane %v1152, 2
        %v1191 = vrot.slane %v1153, 2
        %v1192 = vsel %vm544, %v1190, %v1191
        %v1193 = vrot.slane %v1154, 2
        %v1194 = vsel %vm544, %v1191, %v1193
        %v1210 = vadd.f32 %v1124, %v1170
        %v1211 = vadd.f32 %v1125, %v1172
        %v1212 = vadd.f32 %v1126, %v1174
        %v1213 = vadd.f32 %v1127, %v1175
        %v1214 = vadd.f32 %v1128, %v1177
        %v1215 = vadd.f32 %v1129, %v1179
        %v1216 = vadd.f32 %v1130, %v1180
        %v1217 = vadd.f32 %v1131, %v1182
        %v1218 = vadd.f32 %v1132, %v1184
        %v1219 = vadd.f32 %v1133, %v1185
        %v1220 = vadd.f32 %v1134, %v1187
        %v1221 = vadd.f32 %v1135, %v1189
        %v1222 = vadd.f32 %v1136, %v1190
        %v1223 = vadd.f32 %v1137, %v1192
        %v1224 = vadd.f32 %v1138, %v1194
        %v1225 = vperm.slane %v360, 0
        %v1226 = vmul.f32 %v1003, %v1225
        %v1227 = vmul.f32 %v1004, %v1225
        %v1228 = vmul.f32 %v1005, %v1225
        %v1229 = vmul.f32 %v1007, %v1225
        %v1230 = vmul.f32 %v1008, %v1225
        %v1231 = vmul.f32 %v1009, %v1225
        %v1232 = vmul.f32 %v1011, %v1225
        %v1233 = vmul.f32 %v1012, %v1225
        %v1234 = vmul.f32 %v1013, %v1225
        %v1235 = vmul.f32 %v1015, %v1225
        %v1236 = vmul.f32 %v1016, %v1225
        %v1237 = vmul.f32 %v1017, %v1225
        %v1238 = vmul.f32 %v1019, %v1225
        %v1239 = vmul.f32 %v1020, %v1225
        %v1240 = vmul.f32 %v1021, %v1225
        %v1256 = vrot.slane %v1226, 3
        %v1257 = vrot.slane %v1227, 3
        %v1258 = vsel %vm631, %v1256, %v1257
        %v1259 = vrot.slane %v1228, 3
        %v1260 = vsel %vm631, %v1257, %v1259
        %v1261 = vrot.slane %v1229, 3
        %v1262 = vrot.slane %v1230, 3
        %v1263 = vsel %vm631, %v1261, %v1262
        %v1264 = vrot.slane %v1231, 3
        %v1265 = vsel %vm631, %v1262, %v1264
        %v1266 = vrot.slane %v1232, 3
        %v1267 = vrot.slane %v1233, 3
        %v1268 = vsel %vm631, %v1266, %v1267
        %v1269 = vrot.slane %v1234, 3
        %v1270 = vsel %vm631, %v1267, %v1269
        %v1271 = vrot.slane %v1235, 3
        %v1272 = vrot.slane %v1236, 3
        %v1273 = vsel %vm631, %v1271, %v1272
        %v1274 = vrot.slane %v1237, 3
        %v1275 = vsel %vm631, %v1272, %v1274
        %v1276 = vrot.slane %v1238, 3
        %v1277 = vrot.slane %v1239, 3
        %v1278 = vsel %vm631, %v1276, %v1277
        %v1279 = vrot.slane %v1240, 3
        %v1280 = vsel %vm631, %v1277, %v1279
        %v1296 = vadd.f32 %v1210, %v1256
        %v1297 = vadd.f32 %v1211, %v1258
        %v1298 = vadd.f32 %v1212, %v1260
        %v1299 = vadd.f32 %v1213, %v1261
        %v1300 = vadd.f32 %v1214, %v1263
        %v1301 = vadd.f32 %v1215, %v1265
        %v1302 = vadd.f32 %v1216, %v1266
        %v1303 = vadd.f32 %v1217, %v1268
        %v1304 = vadd.f32 %v1218, %v1270
        %v1305 = vadd.f32 %v1219, %v1271
        %v1306 = vadd.f32 %v1220, %v1273
        %v1307 = vadd.f32 %v1221, %v1275
        %v1308 = vadd.f32 %v1222, %v1276
        %v1309 = vadd.f32 %v1223, %v1278
        %v1310 = vadd.f32 %v1224, %v1280
        %s1311 = sadd.s32 %s372, 3
        %s1312 = smul.u32 %s1311, 32
        %s1313 = scalar_lea.vmem [#allocation2], %s1312
        %v1314 = vld [vmem:[%s1313] sm:$0xff]
        %v1315 = vld [vmem:[%s1313 + $0x8] sm:$0xff]
        %v1316 = vld [vmem:[%s1313 + $0x10] sm:$0xff]
        %v1317 = vld [vmem:[%s1313 + $0x18] sm:$0x3]
        %v1318 = vld [vmem:[%s1313 + $0x20] sm:$0xff]
        %v1319 = vld [vmem:[%s1313 + $0x28] sm:$0xff]
        %v1320 = vld [vmem:[%s1313 + $0x30] sm:$0xff]
        %v1321 = vld [vmem:[%s1313 + $0x38] sm:$0x3]
        %v1322 = vld [vmem:[%s1313 + $0x40] sm:$0xff]
        %v1323 = vld [vmem:[%s1313 + $0x48] sm:$0xff]
        %v1324 = vld [vmem:[%s1313 + $0x50] sm:$0xff]
        %v1325 = vld [vmem:[%s1313 + $0x58] sm:$0x3]
        %v1326 = vld [vmem:[%s1313 + $0x60] sm:$0xff]
        %v1327 = vld [vmem:[%s1313 + $0x68] sm:$0xff]
        %v1328 = vld [vmem:[%s1313 + $0x70] sm:$0xff]
        %v1329 = vld [vmem:[%s1313 + $0x78] sm:$0x3]
        %v1330 = vld [vmem:[%s1313 + $0x80] sm:$0xff]
        %v1331 = vld [vmem:[%s1313 + $0x88] sm:$0xff]
        %v1332 = vld [vmem:[%s1313 + $0x90] sm:$0xff]
        %v1333 = vld [vmem:[%s1313 + $0x98] sm:$0x3]
        %v1334 = vperm.slane %v361, 0
        %v1335 = vmul.f32 %v1314, %v1334
        %v1336 = vmul.f32 %v1315, %v1334
        %v1337 = vmul.f32 %v1316, %v1334
        %v1338 = vmul.f32 %v1318, %v1334
        %v1339 = vmul.f32 %v1319, %v1334
        %v1340 = vmul.f32 %v1320, %v1334
        %v1341 = vmul.f32 %v1322, %v1334
        %v1342 = vmul.f32 %v1323, %v1334
        %v1343 = vmul.f32 %v1324, %v1334
        %v1344 = vmul.f32 %v1326, %v1334
        %v1345 = vmul.f32 %v1327, %v1334
        %v1346 = vmul.f32 %v1328, %v1334
        %v1347 = vmul.f32 %v1330, %v1334
        %v1348 = vmul.f32 %v1331, %v1334
        %v1349 = vmul.f32 %v1332, %v1334
        %v1350 = vadd.f32 %v1296, %v1335
        %v1351 = vadd.f32 %v1297, %v1336
        %v1352 = vadd.f32 %v1298, %v1337
        %v1353 = vadd.f32 %v1299, %v1338
        %v1354 = vadd.f32 %v1300, %v1339
        %v1355 = vadd.f32 %v1301, %v1340
        %v1356 = vadd.f32 %v1302, %v1341
        %v1357 = vadd.f32 %v1303, %v1342
        %v1358 = vadd.f32 %v1304, %v1343
        %v1359 = vadd.f32 %v1305, %v1344
        %v1360 = vadd.f32 %v1306, %v1345
        %v1361 = vadd.f32 %v1307, %v1346
        %v1362 = vadd.f32 %v1308, %v1347
        %v1363 = vadd.f32 %v1309, %v1348
        %v1364 = vadd.f32 %v1310, %v1349
        %v1365 = vperm.slane %v362, 0
        %v1366 = vmul.f32 %v1314, %v1365
        %v1367 = vmul.f32 %v1315, %v1365
        %v1368 = vmul.f32 %v1316, %v1365
        %v1369 = vmul.f32 %v1318, %v1365
        %v1370 = vmul.f32 %v1319, %v1365
        %v1371 = vmul.f32 %v1320, %v1365
        %v1372 = vmul.f32 %v1322, %v1365
        %v1373 = vmul.f32 %v1323, %v1365
        %v1374 = vmul.f32 %v1324, %v1365
        %v1375 = vmul.f32 %v1326, %v1365
        %v1376 = vmul.f32 %v1327, %v1365
        %v1377 = vmul.f32 %v1328, %v1365
        %v1378 = vmul.f32 %v1330, %v1365
        %v1379 = vmul.f32 %v1331, %v1365
        %v1380 = vmul.f32 %v1332, %v1365
        %v1396 = vrot.slane %v1366, 1
        %v1397 = vrot.slane %v1367, 1
        %v1398 = vsel %vm457, %v1396, %v1397
        %v1399 = vrot.slane %v1368, 1
        %v1400 = vsel %vm457, %v1397, %v1399
        %v1401 = vrot.slane %v1369, 1
        %v1402 = vrot.slane %v1370, 1
        %v1403 = vsel %vm457, %v1401, %v1402
        %v1404 = vrot.slane %v1371, 1
        %v1405 = vsel %vm457, %v1402, %v1404
        %v1406 = vrot.slane %v1372, 1
        %v1407 = vrot.slane %v1373, 1
        %v1408 = vsel %vm457, %v1406, %v1407
        %v1409 = vrot.slane %v1374, 1
        %v1410 = vsel %vm457, %v1407, %v1409
        %v1411 = vrot.slane %v1375, 1
        %v1412 = vrot.slane %v1376, 1
        %v1413 = vsel %vm457, %v1411, %v1412
        %v1414 = vrot.slane %v1377, 1
        %v1415 = vsel %vm457, %v1412, %v1414
        %v1416 = vrot.slane %v1378, 1
        %v1417 = vrot.slane %v1379, 1
        %v1418 = vsel %vm457, %v1416, %v1417
        %v1419 = vrot.slane %v1380, 1
        %v1420 = vsel %vm457, %v1417, %v1419
        %v1436 = vadd.f32 %v1350, %v1398
        %v1437 = vadd.f32 %v1351, %v1400
        %v1438 = vadd.f32 %v1352, %v1399
        %v1439 = vadd.f32 %v1353, %v1403
        %v1440 = vadd.f32 %v1354, %v1405
        %v1441 = vadd.f32 %v1355, %v1404
        %v1442 = vadd.f32 %v1356, %v1408
        %v1443 = vadd.f32 %v1357, %v1410
        %v1444 = vadd.f32 %v1358, %v1409
        %v1445 = vadd.f32 %v1359, %v1413
        %v1446 = vadd.f32 %v1360, %v1415
        %v1447 = vadd.f32 %v1361, %v1414
        %v1448 = vadd.f32 %v1362, %v1418
        %v1449 = vadd.f32 %v1363, %v1420
        %v1450 = vadd.f32 %v1364, %v1419
        %v1451 = vperm.slane %v363, 0
        %v1452 = vmul.f32 %v1315, %v1451
        %v1453 = vmul.f32 %v1316, %v1451
        %v1454 = vmul.f32 %v1317, %v1451
        %v1455 = vmul.f32 %v1319, %v1451
        %v1456 = vmul.f32 %v1320, %v1451
        %v1457 = vmul.f32 %v1321, %v1451
        %v1458 = vmul.f32 %v1323, %v1451
        %v1459 = vmul.f32 %v1324, %v1451
        %v1460 = vmul.f32 %v1325, %v1451
        %v1461 = vmul.f32 %v1327, %v1451
        %v1462 = vmul.f32 %v1328, %v1451
        %v1463 = vmul.f32 %v1329, %v1451
        %v1464 = vmul.f32 %v1331, %v1451
        %v1465 = vmul.f32 %v1332, %v1451
        %v1466 = vmul.f32 %v1333, %v1451
        %v1482 = vrot.slane %v1452, 2
        %v1483 = vrot.slane %v1453, 2
        %v1484 = vsel %vm544, %v1482, %v1483
        %v1485 = vrot.slane %v1454, 2
        %v1486 = vsel %vm544, %v1483, %v1485
        %v1487 = vrot.slane %v1455, 2
        %v1488 = vrot.slane %v1456, 2
        %v1489 = vsel %vm544, %v1487, %v1488
        %v1490 = vrot.slane %v1457, 2
        %v1491 = vsel %vm544, %v1488, %v1490
        %v1492 = vrot.slane %v1458, 2
        %v1493 = vrot.slane %v1459, 2
        %v1494 = vsel %vm544, %v1492, %v1493
        %v1495 = vrot.slane %v1460, 2
        %v1496 = vsel %vm544, %v1493, %v1495
        %v1497 = vrot.slane %v1461, 2
        %v1498 = vrot.slane %v1462, 2
        %v1499 = vsel %vm544, %v1497, %v1498
        %v1500 = vrot.slane %v1463, 2
        %v1501 = vsel %vm544, %v1498, %v1500
        %v1502 = vrot.slane %v1464, 2
        %v1503 = vrot.slane %v1465, 2
        %v1504 = vsel %vm544, %v1502, %v1503
        %v1505 = vrot.slane %v1466, 2
        %v1506 = vsel %vm544, %v1503, %v1505
        %v1522 = vadd.f32 %v1436, %v1482
        %v1523 = vadd.f32 %v1437, %v1484
        %v1524 = vadd.f32 %v1438, %v1486
        %v1525 = vadd.f32 %v1439, %v1487
        %v1526 = vadd.f32 %v1440, %v1489
        %v1527 = vadd.f32 %v1441, %v1491
        %v1528 = vadd.f32 %v1442, %v1492
        %v1529 = vadd.f32 %v1443, %v1494
        %v1530 = vadd.f32 %v1444, %v1496
        %v1531 = vadd.f32 %v1445, %v1497
        %v1532 = vadd.f32 %v1446, %v1499
        %v1533 = vadd.f32 %v1447, %v1501
        %v1534 = vadd.f32 %v1448, %v1502
        %v1535 = vadd.f32 %v1449, %v1504
        %v1536 = vadd.f32 %v1450, %v1506
        %v1537 = vperm.slane %v364, 0
        %v1538 = vmul.f32 %v1315, %v1537
        %v1539 = vmul.f32 %v1316, %v1537
        %v1540 = vmul.f32 %v1317, %v1537
        %v1541 = vmul.f32 %v1319, %v1537
        %v1542 = vmul.f32 %v1320, %v1537
        %v1543 = vmul.f32 %v1321, %v1537
        %v1544 = vmul.f32 %v1323, %v1537
        %v1545 = vmul.f32 %v1324, %v1537
        %v1546 = vmul.f32 %v1325, %v1537
        %v1547 = vmul.f32 %v1327, %v1537
        %v1548 = vmul.f32 %v1328, %v1537
        %v1549 = vmul.f32 %v1329, %v1537
        %v1550 = vmul.f32 %v1331, %v1537
        %v1551 = vmul.f32 %v1332, %v1537
        %v1552 = vmul.f32 %v1333, %v1537
        %v1568 = vrot.slane %v1538, 3
        %v1569 = vrot.slane %v1539, 3
        %v1570 = vsel %vm631, %v1568, %v1569
        %v1571 = vrot.slane %v1540, 3
        %v1572 = vsel %vm631, %v1569, %v1571
        %v1573 = vrot.slane %v1541, 3
        %v1574 = vrot.slane %v1542, 3
        %v1575 = vsel %vm631, %v1573, %v1574
        %v1576 = vrot.slane %v1543, 3
        %v1577 = vsel %vm631, %v1574, %v1576
        %v1578 = vrot.slane %v1544, 3
        %v1579 = vrot.slane %v1545, 3
        %v1580 = vsel %vm631, %v1578, %v1579
        %v1581 = vrot.slane %v1546, 3
        %v1582 = vsel %vm631, %v1579, %v1581
        %v1583 = vrot.slane %v1547, 3
        %v1584 = vrot.slane %v1548, 3
        %v1585 = vsel %vm631, %v1583, %v1584
        %v1586 = vrot.slane %v1549, 3
        %v1587 = vsel %vm631, %v1584, %v1586
        %v1588 = vrot.slane %v1550, 3
        %v1589 = vrot.slane %v1551, 3
        %v1590 = vsel %vm631, %v1588, %v1589
        %v1591 = vrot.slane %v1552, 3
        %v1592 = vsel %vm631, %v1589, %v1591
        %v1608 = vadd.f32 %v1522, %v1568
        %v1609 = vadd.f32 %v1523, %v1570
        %v1610 = vadd.f32 %v1524, %v1572
        %v1611 = vadd.f32 %v1525, %v1573
        %v1612 = vadd.f32 %v1526, %v1575
        %v1613 = vadd.f32 %v1527, %v1577
        %v1614 = vadd.f32 %v1528, %v1578
        %v1615 = vadd.f32 %v1529, %v1580
        %v1616 = vadd.f32 %v1530, %v1582
        %v1617 = vadd.f32 %v1531, %v1583
        %v1618 = vadd.f32 %v1532, %v1585
        %v1619 = vadd.f32 %v1533, %v1587
        %v1620 = vadd.f32 %v1534, %v1588
        %v1621 = vadd.f32 %v1535, %v1590
        %v1622 = vadd.f32 %v1536, %v1592
        %v1624 = vperm.slane %v365, 0
        %v1626 = vadd.f32 %v1608, %v1624
        %v1627 = vadd.f32 %v1609, %v1624
        %v1628 = vadd.f32 %v1610, %v1624
        %v1629 = vadd.f32 %v1611, %v1624
        %v1630 = vadd.f32 %v1612, %v1624
        %v1631 = vadd.f32 %v1613, %v1624
        %v1632 = vadd.f32 %v1614, %v1624
        %v1633 = vadd.f32 %v1615, %v1624
        %v1634 = vadd.f32 %v1616, %v1624
        %v1635 = vadd.f32 %v1617, %v1624
        %v1636 = vadd.f32 %v1618, %v1624
        %v1637 = vadd.f32 %v1619, %v1624
        %v1638 = vadd.f32 %v1620, %v1624
        %v1639 = vadd.f32 %v1621, %v1624
        %v1640 = vadd.f32 %v1622, %v1624
        %s1641 = smul.u32 %s372, 24
        %s1642 = scalar_lea.vmem %s232, %s1641
        %vm1643 = vcmask 31750
        %1644 = vst.msk [vmem:[%s1642 - $0x6] sm:$0xc0] %vm1643, %v1626
        %1645 = vst.msk [vmem:[%s1642 + $0x2] sm:$0xff] %vm233, %v1627
        %vm1646 = vcmask 30720
        %1647 = vst.msk [vmem:[%s1642 + $0xa] sm:$0x7f] %vm1646, %v1628
        %1648 = vst.msk [vmem:[%s1642 + $0x12] sm:$0xc0] %vm1643, %v1629
        %1649 = vst.msk [vmem:[%s1642 + $0x1a] sm:$0xff] %vm233, %v1630
        %1650 = vst.msk [vmem:[%s1642 + $0x22] sm:$0x7f] %vm1646, %v1631
        %1651 = vst.msk [vmem:[%s1642 + $0x2a] sm:$0xc0] %vm1643, %v1632
        %1652 = vst.msk [vmem:[%s1642 + $0x32] sm:$0xff] %vm233, %v1633
        %1653 = vst.msk [vmem:[%s1642 + $0x3a] sm:$0x7f] %vm1646, %v1634
        %1654 = vst.msk [vmem:[%s1642 + $0x42] sm:$0xc0] %vm1643, %v1635
        %1655 = vst.msk [vmem:[%s1642 + $0x4a] sm:$0xff] %vm233, %v1636
        %1656 = vst.msk [vmem:[%s1642 + $0x52] sm:$0x7f] %vm1646, %v1637
        %1657 = vst.msk [vmem:[%s1642 + $0x5a] sm:$0xc0] %vm1643, %v1638
        %1658 = vst.msk [vmem:[%s1642 + $0x62] sm:$0xff] %vm233, %v1639
        %1659 = vst.msk [vmem:[%s1642 + $0x6a] sm:$0x7f] %vm1646, %v1640
      $region37: #{tpu_custom_call.1} parent=31 // loop_footer
        %s371 = sadd.s32 1, %s367
      $region38: #{tpu_custom_call.1} parent=31 // loop_footer_branch
        %366 = sbr.rel target = $region34
      $region39: #{tpu_custom_call.1} parent=31 // loop_exit
        _
      %s1660 = scalar_lea.vmem [#allocation2], 480
      %v1661 = vld [vmem:[%s1660] sm:$0xff]
      %v1662 = vld [vmem:[%s1660 + $0x8] sm:$0xff]
      %v1663 = vld [vmem:[%s1660 + $0x10] sm:$0xff]
      %v1664 = vld [vmem:[%s1660 + $0x18] sm:$0x3]
      %v1665 = vld [vmem:[%s1660 + $0x20] sm:$0xff]
      %v1666 = vld [vmem:[%s1660 + $0x28] sm:$0xff]
      %v1667 = vld [vmem:[%s1660 + $0x30] sm:$0xff]
      %v1668 = vld [vmem:[%s1660 + $0x38] sm:$0x3]
      %v1669 = vperm.slane %v349, 0
      %v1670 = vmul.f32 %v1661, %v1669
      %v1671 = vmul.f32 %v1662, %v1669
      %v1672 = vmul.f32 %v1663, %v1669
      %v1673 = vmul.f32 %v1665, %v1669
      %v1674 = vmul.f32 %v1666, %v1669
      %v1675 = vmul.f32 %v1667, %v1669
      %v1676 = vadd.f32 %v1670, 0.0
      %v1677 = vadd.f32 %v1671, 0.0
      %v1678 = vadd.f32 %v1672, 0.0
      %v1679 = vadd.f32 %v1673, 0.0
      %v1680 = vadd.f32 %v1674, 0.0
      %v1681 = vadd.f32 %v1675, 0.0
      %v1682 = vperm.slane %v350, 0
      %v1683 = vmul.f32 %v1661, %v1682
      %v1684 = vmul.f32 %v1662, %v1682
      %v1685 = vmul.f32 %v1663, %v1682
      %v1686 = vmul.f32 %v1665, %v1682
      %v1687 = vmul.f32 %v1666, %v1682
      %v1688 = vmul.f32 %v1667, %v1682
      %vm1695 = vcmask 1046528
      %v1696 = vrot.slane %v1683, 1
      %v1697 = vrot.slane %v1684, 1
      %v1698 = vsel %vm1695, %v1696, %v1697
      %v1699 = vrot.slane %v1685, 1
      %v1700 = vsel %vm1695, %v1697, %v1699
      %v1701 = vrot.slane %v1686, 1
      %v1702 = vrot.slane %v1687, 1
      %v1703 = vsel %vm1695, %v1701, %v1702
      %v1704 = vrot.slane %v1688, 1
      %v1705 = vsel %vm1695, %v1702, %v1704
      %v1712 = vadd.f32 %v1676, %v1698
      %v1713 = vadd.f32 %v1677, %v1700
      %v1714 = vadd.f32 %v1678, %v1699
      %v1715 = vadd.f32 %v1679, %v1703
      %v1716 = vadd.f32 %v1680, %v1705
      %v1717 = vadd.f32 %v1681, %v1704
      %v1718 = vperm.slane %v351, 0
      %v1719 = vmul.f32 %v1662, %v1718
      %v1720 = vmul.f32 %v1663, %v1718
      %v1721 = vmul.f32 %v1664, %v1718
      %v1722 = vmul.f32 %v1666, %v1718
      %v1723 = vmul.f32 %v1667, %v1718
      %v1724 = vmul.f32 %v1668, %v1718
      %vm1731 = vcmask 1045504
      %v1732 = vrot.slane %v1719, 2
      %v1733 = vrot.slane %v1720, 2
      %v1734 = vsel %vm1731, %v1732, %v1733
      %v1735 = vrot.slane %v1721, 2
      %v1736 = vsel %vm1731, %v1733, %v1735
      %v1737 = vrot.slane %v1722, 2
      %v1738 = vrot.slane %v1723, 2
      %v1739 = vsel %vm1731, %v1737, %v1738
      %v1740 = vrot.slane %v1724, 2
      %v1741 = vsel %vm1731, %v1738, %v1740
      %v1748 = vadd.f32 %v1712, %v1732
      %v1749 = vadd.f32 %v1713, %v1734
      %v1750 = vadd.f32 %v1714, %v1736
      %v1751 = vadd.f32 %v1715, %v1737
      %v1752 = vadd.f32 %v1716, %v1739
      %v1753 = vadd.f32 %v1717, %v1741
      %v1754 = vperm.slane %v352, 0
      %v1755 = vmul.f32 %v1662, %v1754
      %v1756 = vmul.f32 %v1663, %v1754
      %v1757 = vmul.f32 %v1664, %v1754
      %v1758 = vmul.f32 %v1666, %v1754
      %v1759 = vmul.f32 %v1667, %v1754
      %v1760 = vmul.f32 %v1668, %v1754
      %vm1767 = vcmask 1044480
      %v1768 = vrot.slane %v1755, 3
      %v1769 = vrot.slane %v1756, 3
      %v1770 = vsel %vm1767, %v1768, %v1769
      %v1771 = vrot.slane %v1757, 3
      %v1772 = vsel %vm1767, %v1769, %v1771
      %v1773 = vrot.slane %v1758, 3
      %v1774 = vrot.slane %v1759, 3
      %v1775 = vsel %vm1767, %v1773, %v1774
      %v1776 = vrot.slane %v1760, 3
      %v1777 = vsel %vm1767, %v1774, %v1776
      %v1784 = vadd.f32 %v1748, %v1768
      %v1785 = vadd.f32 %v1749, %v1770
      %v1786 = vadd.f32 %v1750, %v1772
      %v1787 = vadd.f32 %v1751, %v1773
      %v1788 = vadd.f32 %v1752, %v1775
      %v1789 = vadd.f32 %v1753, %v1777
      %s1790 = scalar_lea.vmem [#allocation2], 512
      %v1791 = vld [vmem:[%s1790] sm:$0xff]
      %v1792 = vld [vmem:[%s1790 + $0x8] sm:$0xff]
      %v1793 = vld [vmem:[%s1790 + $0x10] sm:$0xff]
      %v1794 = vld [vmem:[%s1790 + $0x18] sm:$0x3]
      %v1795 = vld [vmem:[%s1790 + $0x20] sm:$0xff]
      %v1796 = vld [vmem:[%s1790 + $0x28] sm:$0xff]
      %v1797 = vld [vmem:[%s1790 + $0x30] sm:$0xff]
      %v1798 = vld [vmem:[%s1790 + $0x38] sm:$0x3]
      %v1799 = vperm.slane %v353, 0
      %v1800 = vmul.f32 %v1791, %v1799
      %v1801 = vmul.f32 %v1792, %v1799
      %v1802 = vmul.f32 %v1793, %v1799
      %v1803 = vmul.f32 %v1795, %v1799
      %v1804 = vmul.f32 %v1796, %v1799
      %v1805 = vmul.f32 %v1797, %v1799
      %v1806 = vadd.f32 %v1784, %v1800
      %v1807 = vadd.f32 %v1785, %v1801
      %v1808 = vadd.f32 %v1786, %v1802
      %v1809 = vadd.f32 %v1787, %v1803
      %v1810 = vadd.f32 %v1788, %v1804
      %v1811 = vadd.f32 %v1789, %v1805
      %v1812 = vperm.slane %v354, 0
      %v1813 = vmul.f32 %v1791, %v1812
      %v1814 = vmul.f32 %v1792, %v1812
      %v1815 = vmul.f32 %v1793, %v1812
      %v1816 = vmul.f32 %v1795, %v1812
      %v1817 = vmul.f32 %v1796, %v1812
      %v1818 = vmul.f32 %v1797, %v1812
      %v1825 = vrot.slane %v1813, 1
      %v1826 = vrot.slane %v1814, 1
      %v1827 = vsel %vm1695, %v1825, %v1826
      %v1828 = vrot.slane %v1815, 1
      %v1829 = vsel %vm1695, %v1826, %v1828
      %v1830 = vrot.slane %v1816, 1
      %v1831 = vrot.slane %v1817, 1
      %v1832 = vsel %vm1695, %v1830, %v1831
      %v1833 = vrot.slane %v1818, 1
      %v1834 = vsel %vm1695, %v1831, %v1833
      %v1841 = vadd.f32 %v1806, %v1827
      %v1842 = vadd.f32 %v1807, %v1829
      %v1843 = vadd.f32 %v1808, %v1828
      %v1844 = vadd.f32 %v1809, %v1832
      %v1845 = vadd.f32 %v1810, %v1834
      %v1846 = vadd.f32 %v1811, %v1833
      %v1847 = vperm.slane %v355, 0
      %v1848 = vmul.f32 %v1792, %v1847
      %v1849 = vmul.f32 %v1793, %v1847
      %v1850 = vmul.f32 %v1794, %v1847
      %v1851 = vmul.f32 %v1796, %v1847
      %v1852 = vmul.f32 %v1797, %v1847
      %v1853 = vmul.f32 %v1798, %v1847
      %v1860 = vrot.slane %v1848, 2
      %v1861 = vrot.slane %v1849, 2
      %v1862 = vsel %vm1731, %v1860, %v1861
      %v1863 = vrot.slane %v1850, 2
      %v1864 = vsel %vm1731, %v1861, %v1863
      %v1865 = vrot.slane %v1851, 2
      %v1866 = vrot.slane %v1852, 2
      %v1867 = vsel %vm1731, %v1865, %v1866
      %v1868 = vrot.slane %v1853, 2
      %v1869 = vsel %vm1731, %v1866, %v1868
      %v1876 = vadd.f32 %v1841, %v1860
      %v1877 = vadd.f32 %v1842, %v1862
      %v1878 = vadd.f32 %v1843, %v1864
      %v1879 = vadd.f32 %v1844, %v1865
      %v1880 = vadd.f32 %v1845, %v1867
      %v1881 = vadd.f32 %v1846, %v1869
      %v1882 = vperm.slane %v356, 0
      %v1883 = vmul.f32 %v1792, %v1882
      %v1884 = vmul.f32 %v1793, %v1882
      %v1885 = vmul.f32 %v1794, %v1882
      %v1886 = vmul.f32 %v1796, %v1882
      %v1887 = vmul.f32 %v1797, %v1882
      %v1888 = vmul.f32 %v1798, %v1882
      %v1895 = vrot.slane %v1883, 3
      %v1896 = vrot.slane %v1884, 3
      %v1897 = vsel %vm1767, %v1895, %v1896
      %v1898 = vrot.slane %v1885, 3
      %v1899 = vsel %vm1767, %v1896, %v1898
      %v1900 = vrot.slane %v1886, 3
      %v1901 = vrot.slane %v1887, 3
      %v1902 = vsel %vm1767, %v1900, %v1901
      %v1903 = vrot.slane %v1888, 3
      %v1904 = vsel %vm1767, %v1901, %v1903
      %v1911 = vadd.f32 %v1876, %v1895
      %v1912 = vadd.f32 %v1877, %v1897
      %v1913 = vadd.f32 %v1878, %v1899
      %v1914 = vadd.f32 %v1879, %v1900
      %v1915 = vadd.f32 %v1880, %v1902
      %v1916 = vadd.f32 %v1881, %v1904
      %s1917 = scalar_lea.vmem [#allocation2], 544
      %v1918 = vld [vmem:[%s1917] sm:$0xff]
      %v1919 = vld [vmem:[%s1917 + $0x8] sm:$0xff]
      %v1920 = vld [vmem:[%s1917 + $0x10] sm:$0xff]
      %v1921 = vld [vmem:[%s1917 + $0x18] sm:$0x3]
      %v1922 = vld [vmem:[%s1917 + $0x20] sm:$0xff]
      %v1923 = vld [vmem:[%s1917 + $0x28] sm:$0xff]
      %v1924 = vld [vmem:[%s1917 + $0x30] sm:$0xff]
      %v1925 = vld [vmem:[%s1917 + $0x38] sm:$0x3]
      %v1926 = vperm.slane %v357, 0
      %v1927 = vmul.f32 %v1918, %v1926
      %v1928 = vmul.f32 %v1919, %v1926
      %v1929 = vmul.f32 %v1920, %v1926
      %v1930 = vmul.f32 %v1922, %v1926
      %v1931 = vmul.f32 %v1923, %v1926
      %v1932 = vmul.f32 %v1924, %v1926
      %v1933 = vadd.f32 %v1911, %v1927
      %v1934 = vadd.f32 %v1912, %v1928
      %v1935 = vadd.f32 %v1913, %v1929
      %v1936 = vadd.f32 %v1914, %v1930
      %v1937 = vadd.f32 %v1915, %v1931
      %v1938 = vadd.f32 %v1916, %v1932
      %v1939 = vperm.slane %v358, 0
      %v1940 = vmul.f32 %v1918, %v1939
      %v1941 = vmul.f32 %v1919, %v1939
      %v1942 = vmul.f32 %v1920, %v1939
      %v1943 = vmul.f32 %v1922, %v1939
      %v1944 = vmul.f32 %v1923, %v1939
      %v1945 = vmul.f32 %v1924, %v1939
      %v1952 = vrot.slane %v1940, 1
      %v1953 = vrot.slane %v1941, 1
      %v1954 = vsel %vm1695, %v1952, %v1953
      %v1955 = vrot.slane %v1942, 1
      %v1956 = vsel %vm1695, %v1953, %v1955
      %v1957 = vrot.slane %v1943, 1
      %v1958 = vrot.slane %v1944, 1
      %v1959 = vsel %vm1695, %v1957, %v1958
      %v1960 = vrot.slane %v1945, 1
      %v1961 = vsel %vm1695, %v1958, %v1960
      %v1968 = vadd.f32 %v1933, %v1954
      %v1969 = vadd.f32 %v1934, %v1956
      %v1970 = vadd.f32 %v1935, %v1955
      %v1971 = vadd.f32 %v1936, %v1959
      %v1972 = vadd.f32 %v1937, %v1961
      %v1973 = vadd.f32 %v1938, %v1960
      %v1974 = vperm.slane %v359, 0
      %v1975 = vmul.f32 %v1919, %v1974
      %v1976 = vmul.f32 %v1920, %v1974
      %v1977 = vmul.f32 %v1921, %v1974
      %v1978 = vmul.f32 %v1923, %v1974
      %v1979 = vmul.f32 %v1924, %v1974
      %v1980 = vmul.f32 %v1925, %v1974
      %v1987 = vrot.slane %v1975, 2
      %v1988 = vrot.slane %v1976, 2
      %v1989 = vsel %vm1731, %v1987, %v1988
      %v1990 = vrot.slane %v1977, 2
      %v1991 = vsel %vm1731, %v1988, %v1990
      %v1992 = vrot.slane %v1978, 2
      %v1993 = vrot.slane %v1979, 2
      %v1994 = vsel %vm1731, %v1992, %v1993
      %v1995 = vrot.slane %v1980, 2
      %v1996 = vsel %vm1731, %v1993, %v1995
      %v2003 = vadd.f32 %v1968, %v1987
      %v2004 = vadd.f32 %v1969, %v1989
      %v2005 = vadd.f32 %v1970, %v1991
      %v2006 = vadd.f32 %v1971, %v1992
      %v2007 = vadd.f32 %v1972, %v1994
      %v2008 = vadd.f32 %v1973, %v1996
      %v2009 = vperm.slane %v360, 0
      %v2010 = vmul.f32 %v1919, %v2009
      %v2011 = vmul.f32 %v1920, %v2009
      %v2012 = vmul.f32 %v1921, %v2009
      %v2013 = vmul.f32 %v1923, %v2009
      %v2014 = vmul.f32 %v1924, %v2009
      %v2015 = vmul.f32 %v1925, %v2009
      %v2022 = vrot.slane %v2010, 3
      %v2023 = vrot.slane %v2011, 3
      %v2024 = vsel %vm1767, %v2022, %v2023
      %v2025 = vrot.slane %v2012, 3
      %v2026 = vsel %vm1767, %v2023, %v2025
      %v2027 = vrot.slane %v2013, 3
      %v2028 = vrot.slane %v2014, 3
      %v2029 = vsel %vm1767, %v2027, %v2028
      %v2030 = vrot.slane %v2015, 3
      %v2031 = vsel %vm1767, %v2028, %v2030
      %v2038 = vadd.f32 %v2003, %v2022
      %v2039 = vadd.f32 %v2004, %v2024
      %v2040 = vadd.f32 %v2005, %v2026
      %v2041 = vadd.f32 %v2006, %v2027
      %v2042 = vadd.f32 %v2007, %v2029
      %v2043 = vadd.f32 %v2008, %v2031
      %v2044 = vld [vmem:[%s243] sm:$0xff]
      %v2045 = vld [vmem:[%s243 + $0x8] sm:$0xff]
      %v2046 = vld [vmem:[%s243 + $0x10] sm:$0xff]
      %v2047 = vld [vmem:[%s243 + $0x18] sm:$0x3]
      %v2048 = vld [vmem:[%s243 + $0x20] sm:$0xff]
      %v2049 = vld [vmem:[%s243 + $0x28] sm:$0xff]
      %v2050 = vld [vmem:[%s243 + $0x30] sm:$0xff]
      %v2051 = vld [vmem:[%s243 + $0x38] sm:$0x3]
      %v2052 = vperm.slane %v361, 0
      %v2053 = vmul.f32 %v2044, %v2052
      %v2054 = vmul.f32 %v2045, %v2052
      %v2055 = vmul.f32 %v2046, %v2052
      %v2056 = vmul.f32 %v2048, %v2052
      %v2057 = vmul.f32 %v2049, %v2052
      %v2058 = vmul.f32 %v2050, %v2052
      %v2059 = vadd.f32 %v2038, %v2053
      %v2060 = vadd.f32 %v2039, %v2054
      %v2061 = vadd.f32 %v2040, %v2055
      %v2062 = vadd.f32 %v2041, %v2056
      %v2063 = vadd.f32 %v2042, %v2057
      %v2064 = vadd.f32 %v2043, %v2058
      %v2065 = vperm.slane %v362, 0
      %v2066 = vmul.f32 %v2044, %v2065
      %v2067 = vmul.f32 %v2045, %v2065
      %v2068 = vmul.f32 %v2046, %v2065
      %v2069 = vmul.f32 %v2048, %v2065
      %v2070 = vmul.f32 %v2049, %v2065
      %v2071 = vmul.f32 %v2050, %v2065
      %v2078 = vrot.slane %v2066, 1
      %v2079 = vrot.slane %v2067, 1
      %v2080 = vsel %vm1695, %v2078, %v2079
      %v2081 = vrot.slane %v2068, 1
      %v2082 = vsel %vm1695, %v2079, %v2081
      %v2083 = vrot.slane %v2069, 1
      %v2084 = vrot.slane %v2070, 1
      %v2085 = vsel %vm1695, %v2083, %v2084
      %v2086 = vrot.slane %v2071, 1
      %v2087 = vsel %vm1695, %v2084, %v2086
      %v2094 = vadd.f32 %v2059, %v2080
      %v2095 = vadd.f32 %v2060, %v2082
      %v2096 = vadd.f32 %v2061, %v2081
      %v2097 = vadd.f32 %v2062, %v2085
      %v2098 = vadd.f32 %v2063, %v2087
      %v2099 = vadd.f32 %v2064, %v2086
      %v2100 = vperm.slane %v363, 0
      %v2101 = vmul.f32 %v2045, %v2100
      %v2102 = vmul.f32 %v2046, %v2100
      %v2103 = vmul.f32 %v2047, %v2100
      %v2104 = vmul.f32 %v2049, %v2100
      %v2105 = vmul.f32 %v2050, %v2100
      %v2106 = vmul.f32 %v2051, %v2100
      %v2113 = vrot.slane %v2101, 2
      %v2114 = vrot.slane %v2102, 2
      %v2115 = vsel %vm1731, %v2113, %v2114
      %v2116 = vrot.slane %v2103, 2
      %v2117 = vsel %vm1731, %v2114, %v2116
      %v2118 = vrot.slane %v2104, 2
      %v2119 = vrot.slane %v2105, 2
      %v2120 = vsel %vm1731, %v2118, %v2119
      %v2121 = vrot.slane %v2106, 2
      %v2122 = vsel %vm1731, %v2119, %v2121
      %v2129 = vadd.f32 %v2094, %v2113
      %v2130 = vadd.f32 %v2095, %v2115
      %v2131 = vadd.f32 %v2096, %v2117
      %v2132 = vadd.f32 %v2097, %v2118
      %v2133 = vadd.f32 %v2098, %v2120
      %v2134 = vadd.f32 %v2099, %v2122
      %v2135 = vperm.slane %v364, 0
      %v2136 = vmul.f32 %v2045, %v2135
      %v2137 = vmul.f32 %v2046, %v2135
      %v2138 = vmul.f32 %v2047, %v2135
      %v2139 = vmul.f32 %v2049, %v2135
      %v2140 = vmul.f32 %v2050, %v2135
      %v2141 = vmul.f32 %v2051, %v2135
      %v2148 = vrot.slane %v2136, 3
      %v2149 = vrot.slane %v2137, 3
      %v2150 = vsel %vm1767, %v2148, %v2149
      %v2151 = vrot.slane %v2138, 3
      %v2152 = vsel %vm1767, %v2149, %v2151
      %v2153 = vrot.slane %v2139, 3
      %v2154 = vrot.slane %v2140, 3
      %v2155 = vsel %vm1767, %v2153, %v2154
      %v2156 = vrot.slane %v2141, 3
      %v2157 = vsel %vm1767, %v2154, %v2156
      %v2164 = vadd.f32 %v2129, %v2148
      %v2165 = vadd.f32 %v2130, %v2150
      %v2166 = vadd.f32 %v2131, %v2152
      %v2167 = vadd.f32 %v2132, %v2153
      %v2168 = vadd.f32 %v2133, %v2155
      %v2169 = vadd.f32 %v2134, %v2157
      %v2171 = vperm.slane %v365, 0
      %v2173 = vadd.f32 %v2164, %v2171
      %v2174 = vadd.f32 %v2165, %v2171
      %v2175 = vadd.f32 %v2166, %v2171
      %v2176 = vadd.f32 %v2167, %v2171
      %v2177 = vadd.f32 %v2168, %v2171
      %v2178 = vadd.f32 %v2169, %v2171
      %s2179 = scalar_lea.vmem %s232, 360
      %vm2180 = vcmask 31750
      %2181 = vst.msk [vmem:[%s2179 - $0x6] sm:$0xc0] %vm2180, %v2173
      %2182 = vst.msk [vmem:[%s2179 + $0x2] sm:$0xff] %vm233, %v2174
      %vm2183 = vcmask 30720
      %2184 = vst.msk [vmem:[%s2179 + $0xa] sm:$0x7f] %vm2183, %v2175
      %2185 = vst.msk [vmem:[%s2179 + $0x12] sm:$0xc0] %vm2180, %v2176
      %2186 = vst.msk [vmem:[%s2179 + $0x1a] sm:$0xff] %vm233, %v2177
      %2187 = vst.msk [vmem:[%s2179 + $0x22] sm:$0x7f] %vm2183, %v2178
      %p2188 = scmp.lt.s32.totalorder %s18, 1
      %s2189 = scalar_select %p2188, %s18, 1
      %p2190 = scmp.lt.s32.totalorder %s19, 0
      %s2191 = scalar_select %p2190, %s19, 0
      %s2192 = smul.addr %s2189, 51
      %s2193 = sadd.s32 %s2191, %s2192
      %s2194 = smul.addr %s2193, 8
      %s2195 = scalar_lea.vmem %s3, %s2194
      // Predicated region
      $region40: #{tpu_custom_call.1} parent=31 // pred_check
        %p2196 = pneg %p126
      $region41: #{tpu_custom_call.1} parent=31 // pred_check_branch
        %2198 = sbr.rel (%p2196) target = $region43
      $region42: #{tpu_custom_call.1} parent=31 // pred_region
        _
      $region43: #{tpu_custom_call.1} parent=31 // pred_fallthru
        _
    $region32: #{tpu_custom_call.1} parent=5 // pred_fallthru
      _
    %p2199 = scmp.le.s32.totalorder 2, %s9
    // Predicated region
    $region44: #{tpu_custom_call.1} parent=5 // pred_check
      %p2200 = pneg %p2199
    $region45: #{tpu_custom_call.1} parent=5 // pred_check_branch
      %2202 = sbr.rel (%p2200) target = $region47
    $region46: #{tpu_custom_call.1} parent=5 // pred_region
      %s2203 = ssub.s32 %s9, 2
      // Predicated region
      $region48: #{tpu_custom_call.1} parent=46 // pred_check
        %p2204 = pneg %p132
      $region49: #{tpu_custom_call.1} parent=46 // pred_check_branch
        %2206 = sbr.rel (%p2204) target = $region51
      $region50: #{tpu_custom_call.1} parent=46 // pred_region
        %p2207 = scmp.lt.s32.totalorder %s20, 1
        %s2208 = scalar_select %p2207, %s20, 1
        %p2209 = scmp.lt.s32.totalorder %s21, 0
        %s2210 = scalar_select %p2209, %s21, 0
        %s2211 = smul.addr %s2208, 51
        %s2212 = sadd.s32 %s2210, %s2211
        %s2213 = smul.addr %s2212, 8
        %s2214 = scalar_lea.vmem %s3, %s2213
      $region51: #{tpu_custom_call.1} parent=46 // pred_fallthru
        _
    $region47: #{tpu_custom_call.1} parent=5 // pred_fallthru
      _
  $region6: #{tpu_custom_call.1} parent=0 // loop_footer
    %s13 = sadd.s32 1, %s9
  $region7: #{tpu_custom_call.1} parent=0 // loop_footer_branch
    %8 = sbr.rel target = $region3
  $region8: #{tpu_custom_call.1} parent=0 // loop_exit
    _

</llo_original>
